<compile_context>
chip_gen: v7x
topology: tpu7x:2x2x1
jax: 0.10.0
libtpu: 0.0.40
codegen_flags: <defaults>
</compile_context>

<pallas_src>
import functools
import math

import jax
import jax.numpy as jnp
from jax.experimental import pallas as pl
from jax.experimental.pallas import tpu as pltpu

BN_EPS = 1e-3
BN_SCALE = 1.0 / math.sqrt(1.0 + BN_EPS)
VMEM_LIMIT = 48 * 1024 * 1024  # fits v7x (64 MiB physical) with headroom


def _round_up(x, m):
    return ((x + m - 1) // m) * m


# ----------------------------------------------------------------------------
# Pallas kernels
# ----------------------------------------------------------------------------
def _mm_kernel(x_ref, w_ref, *rest, act, scale, has_bias):
    """bf16 (TM,K)@(K,TN) on the MXU, f32 accumulate, fused scale/bias/act."""
    if has_bias:
        b_ref, o_ref = rest
    else:
        (o_ref,) = rest
    acc = jnp.dot(x_ref[0], w_ref[0], preferred_element_type=jnp.float32)
    if scale != 1.0:
        acc = acc * scale                      # folded BatchNorm scale
    if has_bias:
        acc = acc + b_ref[0]
    if act == "hardswish":
        acc = acc * jnp.clip(acc + 3.0, 0.0, 6.0) * (1.0 / 6.0)
    elif act == "leaky":
        acc = jnp.where(acc >= 0.0, acc, 0.1 * acc)
    # act == "none": identity
    o_ref[0] = acc.astype(o_ref.dtype)


def _conv3s1_kernel(x_ref, w_ref, o_ref, *, act, scale, cin, Wp, M):
    """Direct 3x3 stride-1 conv for one (group, batch, cout-tile).

    x_ref : (1, 1, R, cin)  spatially padded input, H*W rows flattened
            (pad: top 1, bottom 2, left/right 1 -> R = (Ho+3)*Wp, Wp = Wo+2)
    w_ref : (1, 9*cin, TN)  weights flattened in (kh, kw, cin) order
    o_ref : (1, 1, M, TN)   M = Ho*Wp output rows in padded-width layout;
            the wrapper reshapes to (Ho, Wp) and drops the 2 pad columns.

    For tap (kh, kw) the contribution for output row q = oh*Wp + ow is
    x_flat[kh*Wp + kw + q], so each tap is one contiguous 2-D slice and one
    (M, cin) @ (cin, TN) MXU matmul -- no im2col, no in-kernel reshapes.
    """
    TN = o_ref.shape[-1]
    acc = jnp.zeros((M, TN), jnp.float32)
    for kh in range(3):
        for kw in range(3):
            base = kh * Wp + kw
            patch = x_ref[0, 0, base:base + M, :]
            wk = w_ref[0, (kh * 3 + kw) * cin:(kh * 3 + kw + 1) * cin, :]
            acc = acc + jnp.dot(patch, wk, preferred_element_type=jnp.float32)
    if scale != 1.0:
        acc = acc * scale
    if act == "hardswish":
        acc = acc * jnp.clip(acc + 3.0, 0.0, 6.0) * (1.0 / 6.0)
    elif act == "leaky":
        acc = jnp.where(acc >= 0.0, acc, 0.1 * acc)
    o_ref[0, 0] = acc.astype(o_ref.dtype)


def _maxpool5_kernel(x_ref, o_ref):
    """Separable 5x5 stride-1 max pool (input pre-padded with -inf)."""
    x = x_ref[...]
    Ho, Wo = o_ref.shape[1], o_ref.shape[2]
    r = x[:, :, 0:Wo, :]
    for kw in range(1, 5):
        r = jnp.maximum(r, x[:, :, kw:kw + Wo, :])
    out = r[:, 0:Ho, :, :]
    for kh in range(1, 5):
        out = jnp.maximum(out, r[:, kh:kh + Ho, :, :])
    o_ref[...] = out


# ----------------------------------------------------------------------------
# Cached pallas_call builders
# ----------------------------------------------------------------------------
@functools.lru_cache(maxsize=None)
def _get_mm_fn(G, Mp, K, Np, TM, TN, act, scale, has_bias, out_dtype):
    kernel = functools.partial(_mm_kernel, act=act, scale=scale,
                               has_bias=has_bias)
    in_specs = [pl.BlockSpec((1, TM, K), lambda g, i, j: (g, i, 0)),
                pl.BlockSpec((1, K, TN), lambda g, i, j: (g, 0, j))]
    if has_bias:
        in_specs.append(pl.BlockSpec((1, 1, TN), lambda g, i, j: (g, 0, j)))
    return jax.jit(pl.pallas_call(
        kernel,
        out_shape=jax.ShapeDtypeStruct((G, Mp, Np), out_dtype),
        grid=(G, Mp // TM, Np // TN),
        in_specs=in_specs,
        out_specs=pl.BlockSpec((1, TM, TN), lambda g, i, j: (g, i, j)),
        compiler_params=pltpu.CompilerParams(
            dimension_semantics=("parallel", "parallel", "parallel"),
            vmem_limit_bytes=VMEM_LIMIT),
    ))


@functools.lru_cache(maxsize=None)
def _get_conv3s1_fn(G, N, R, M, Wp, cin, K, Np, TN, act, scale, bcast_x,
                    out_dtype):
    kernel = functools.partial(_conv3s1_kernel, act=act, scale=scale,
                               cin=cin, Wp=Wp, M=M)
    if bcast_x:
        x_map = lambda g, n, j: (0, n, 0, 0)   # both head groups share one x
    else:
        x_map = lambda g, n, j: (g, n, 0, 0)
    return jax.jit(pl.pallas_call(
        kernel,
        out_shape=jax.ShapeDtypeStruct((G, N, M, Np), out_dtype),
        grid=(G, N, Np // TN),
        in_specs=[pl.BlockSpec((1, 1, R, cin), x_map),
                  pl.BlockSpec((1, K, TN), lambda g, n, j: (g, 0, j))],
        out_specs=pl.BlockSpec((1, 1, M, TN), lambda g, n, j: (g, n, 0, j)),
        compiler_params=pltpu.CompilerParams(
            dimension_semantics=("parallel", "parallel", "parallel"),
            vmem_limit_bytes=VMEM_LIMIT),
    ))


@functools.lru_cache(maxsize=None)
def _get_pool5_fn(shape, tc):
    B, Hp, Wp, C = shape
    Ho, Wo = Hp - 4, Wp - 4
    return jax.jit(pl.pallas_call(
        _maxpool5_kernel,
        out_shape=jax.ShapeDtypeStruct((B, Ho, Wo, C), jnp.bfloat16),
        grid=(C // tc,),
        in_specs=[pl.BlockSpec((B, Hp, Wp, tc), lambda c: (0, 0, 0, c))],
        out_specs=pl.BlockSpec((B, Ho, Wo, tc), lambda c: (0, 0, 0, c)),
        compiler_params=pltpu.CompilerParams(
            dimension_semantics=("parallel",),
            vmem_limit_bytes=VMEM_LIMIT),
    ))


# ----------------------------------------------------------------------------
# Conv / pooling wrappers (layout glue in JAX, compute in Pallas)
# ----------------------------------------------------------------------------
def _pick_tm(M):
    if M >= 512:
        return 512
    if M >= 256:
        return 256
    if M >= 128:
        return 128
    return _round_up(M, 16)


def conv3x3_s1(x, prm, act="hardswish", scale=BN_SCALE,
               out_dtype=jnp.bfloat16):
    """Direct (no-im2col) 3x3 stride-1 'same' conv on (G, N, H, W, Cin)."""
    wcol = prm["w"]
    cin, cout = prm["cin"], prm["cout"]
    G, K, Np = wcol.shape
    Gx, N, Ho, Wo, _ = x.shape
    bcast = (Gx == 1 and G > 1)                # shared trunk -> 2 seg heads
    Wp = Wo + 2
    # pad: top 1, bottom 2 (the extra bottom row keeps every tap slab of
    # exactly M = Ho*Wp rows in-bounds), left/right 1.
    xp = jnp.pad(x.astype(jnp.bfloat16),
                 ((0, 0), (0, 0), (1, 2), (1, 1), (0, 0)))
    R = (Ho + 3) * Wp
    xflat = xp.reshape(Gx, N, R, cin)          # free: contiguous row-major
    M = Ho * Wp
    TN = Np if Np < 128 else 128
    fn = _get_conv3s1_fn(G, N, R, M, Wp, cin, K, Np, TN, act, float(scale),
                         bcast, out_dtype)
    out = fn(xflat, wcol)
    # drop the 2 padded columns per row (and any cout padding; none here)
    return out.reshape(G, N, Ho, Wp, Np)[:, :, :, :Wo, :cout]


def conv2d(x, prm, stride=1, act="hardswish", scale=BN_SCALE,
           out_dtype=jnp.bfloat16):
    """General conv. 3x3 stride-1 convs with >=16 ch go to the direct kernel;
    1x1 convs are a pure reshape + matmul; the few stride-2 3x3 convs and the
    tiny-channel seg tail use im2col + matmul."""
    k, cin, cout = prm["k"], prm["cin"], prm["cout"]
    if k == 3 and stride == 1 and min(cin, cout) >= 16:
        return conv3x3_s1(x, prm, act=act, scale=scale, out_dtype=out_dtype)

    wcol = prm["w"]
    G, K, Np = wcol.shape
    N = x.shape[1]
    p = k // 2
    xp = jnp.pad(x, ((0, 0), (0, 0), (p, p), (p, p), (0, 0))) if p else x
    Hp, Wp = xp.shape[2], xp.shape[3]
    Ho = (Hp - k) // stride + 1
    Wo = (Wp - k) // stride + 1

    if k == 1 and stride == 1:
        xcol = xp.reshape(G, N * Ho * Wo, cin)
    else:
        cols = []
        for kh in range(k):
            for kw in range(k):
                cols.append(xp[:, :, kh:kh + (Ho - 1) * stride + 1:stride,
                               kw:kw + (Wo - 1) * stride + 1:stride, :])
        xcol = jnp.concatenate(cols, axis=-1).reshape(G, N * Ho * Wo, K)
    xcol = xcol.astype(jnp.bfloat16)

    M = N * Ho * Wo
    TM = _pick_tm(M)
    Mp = _round_up(M, TM)
    if Mp != M:
        xcol = jnp.pad(xcol, ((0, 0), (0, Mp - M), (0, 0)))
    if Np < 128:
        TN = Np                                # exact-width small heads
    elif Np % 256 == 0 and Mp // TM > 2:
        TN = 256
    else:
        TN = 128

    has_bias = "b" in prm
    args = [xcol, wcol]
    if has_bias:
        args.append(prm["b"])
    fn = _get_mm_fn(G, Mp, K, Np, TM, TN, act, float(scale), has_bias,
                    out_dtype)
    out = fn(*args)
    return out[:, :M, :cout].reshape(G, N, Ho, Wo, cout)


def maxpool5_same(x):
    """5x5 stride-1 'same' max pool on (G, N, H, W, C), -inf padding."""
    G, N, H, W, C = x.shape
    xr = x.reshape(G * N, H, W, C)
    xp = jnp.pad(xr, ((0, 0), (2, 2), (2, 2), (0, 0)),
                 constant_values=-jnp.inf)
    tc = 128 if C % 128 == 0 else C
    fn = _get_pool5_fn(tuple(xp.shape), tc)
    return fn(xp).reshape(G, N, H, W, C)


def upsample2(x):
    # nearest-neighbor x2 via broadcast+reshape (no repeat copies)
    G, N, H, W, C = x.shape
    y = jnp.broadcast_to(x[:, :, :, None, :, None, :], (G, N, H, 2, W, 2, C))
    return y.reshape(G, N, 2 * H, 2 * W, C)


# ----------------------------------------------------------------------------
# Parameter initialization (deterministic, synthetic).
# Weights are stored pre-flattened ((kh,kw,cin), cout) in bf16.  cout is kept
# exact for the small heads (no 128-padding) so their outputs are written
# unpadded; couts >= 128 in this network are already multiples of 128.
# ----------------------------------------------------------------------------
class KeyGen:
    def __init__(self, seed=0):
        self._key = jax.random.PRNGKey(seed)

    def __call__(self):
        self._key, sub = jax.random.split(self._key)
        return sub


def make_conv_params(kg, g, c1, c2, k, bias=False):
    fan = c1 * k * k
    w = jax.random.normal(kg(), (g, k, k, c1, c2), jnp.float32) / math.sqrt(fan)
    K = k * k * c1
    Np = c2 if c2 < 128 else _round_up(c2, 128)
    wcol = w.reshape(g, K, c2)          # (kh, kw, cin) flatten matches kernels
    if Np != c2:
        wcol = jnp.pad(wcol, ((0, 0), (0, 0), (0, Np - c2)))
    prm = {"w": wcol.astype(jnp.bfloat16), "k": k, "cin": c1, "cout": c2}
    if bias:
        b = jax.random.normal(kg(), (g, c2), jnp.float32) * 0.01
        if Np != c2:
            b = jnp.pad(b, ((0, 0), (0, Np - c2)))
        prm["b"] = b.reshape(g, 1, Np)
    return prm


def init_Conv(kg, g, c1, c2, k, bias=False):   # Conv = conv(no bias) + BN + act
    return make_conv_params(kg, g, c1, c2, k, bias)


def init_Bottleneck(kg, g, c1, c2):            # e=1.0 inside C3 / CSP
    c_ = c2
    return {"cv1": init_Conv(kg, g, c1, c_, 1),
            "cv2": init_Conv(kg, g, c_, c2, 3)}


def init_C3(kg, g, c1, c2, n):
    c_ = c2 // 2
    return {"cv1": init_Conv(kg, g, c1, c_, 1),
            "cv2": init_Conv(kg, g, c1, c_, 1),
            "cv3": init_Conv(kg, g, 2 * c_, c2, 1),
            "m": [init_Bottleneck(kg, g, c_, c_) for _ in range(n)]}


def init_CSP(kg, g, c1, c2, n):
    c_ = c2 // 2
    return {"cv1": init_Conv(kg, g, c1, c_, 1),
            "cv2": init_Conv(kg, g, c1, c_, 1),   # raw conv (BN applied after cat)
            "cv3": init_Conv(kg, g, c_, c_, 1),   # raw conv (BN applied after cat)
            "cv4": init_Conv(kg, g, 2 * c_, c2, 1),
            "m": [init_Bottleneck(kg, g, c_, c_) for _ in range(n)]}


def init_Focus(kg, g, c1, c2, k):
    return {"conv": init_Conv(kg, g, c1 * 4, c2, k)}


def init_SPP(kg, g, c1, c2):
    c_ = c1 // 2
    return {"cv1": init_Conv(kg, g, c1, c_, 1),
            "cv2": init_Conv(kg, g, c_ * 4, c2, 1)}


def init_Detect(kg, nc, ch, na=3):
    no = nc + 5
    return {"m": [init_Conv(kg, 1, c, na * no, 1, bias=True) for c in ch]}


def init_seghead(kg, g):
    # g=2: lane (index 0) and drivable-area (index 1) heads fused
    return {"c0": init_Conv(kg, g, 256, 128, 3),
            "c3a": init_C3(kg, g, 128, 64, 1),
            "c1": init_Conv(kg, g, 64, 32, 3),
            "c2": init_Conv(kg, g, 32, 16, 3),
            "c3b": init_C3(kg, g, 16, 8, 1),
            "c3": init_Conv(kg, g, 8, 2, 3)}


def init_yolop(kg, nc_bosch=16):
    P = {}
    P["bb1"] = {"focus": init_Focus(kg, 1, 3, 32, 3),
                "conv1": init_Conv(kg, 1, 32, 64, 3),
                "c3_1": init_C3(kg, 1, 64, 64, 1),
                "conv2": init_Conv(kg, 1, 64, 128, 3),
                "c3_2": init_C3(kg, 1, 128, 128, 3)}
    P["bb2"] = {"conv": init_Conv(kg, 1, 128, 256, 3),
                "c3": init_C3(kg, 1, 256, 256, 3)}
    P["bb3"] = {"conv": init_Conv(kg, 1, 256, 512, 3),
                "spp": init_SPP(kg, 1, 512, 512),
                "c3": init_C3(kg, 1, 512, 512, 1),
                "conv2": init_Conv(kg, 1, 512, 256, 1)}
    P["out_csp"] = init_CSP(kg, 1, 512, 256, 1)
    P["out_conv"] = init_Conv(kg, 1, 256, 128, 1)
    P["det_p1"] = init_C3(kg, 1, 256, 128, 1)
    P["det_p2"] = init_Conv(kg, 1, 128, 128, 3)
    P["det_p4"] = init_C3(kg, 1, 256, 256, 1)
    P["det_p5"] = init_Conv(kg, 1, 256, 256, 3)
    P["det_p7"] = init_C3(kg, 1, 512, 512, 1)
    P["det_out"] = init_Detect(kg, nc_bosch, [128, 256, 512])
    P["seg"] = init_seghead(kg, 2)
    return P


# ----------------------------------------------------------------------------
# Module "apply" functions (all operate on (G, N, H, W, C) tensors)
# ----------------------------------------------------------------------------
def apply_Conv(x, p, s=1, out_dtype=jnp.bfloat16):
    # conv + folded BN + Hardswish, fused inside the Pallas conv kernel
    return conv2d(x, p, stride=s, act="hardswish", scale=BN_SCALE,
                  out_dtype=out_dtype)


def apply_Bottleneck(x, p, shortcut):
    y = apply_Conv(x, p["cv1"], 1)
    y = apply_Conv(y, p["cv2"], 1)
    return x + y if shortcut else y


def apply_C3(x, p, shortcut=True):
    y1 = apply_Conv(x, p["cv1"], 1)
    for bp in p["m"]:
        y1 = apply_Bottleneck(y1, bp, shortcut)
    y2 = apply_Conv(x, p["cv2"], 1)
    y = jnp.concatenate([y1, y2], axis=-1)
    return apply_Conv(y, p["cv3"], 1)


def apply_CSP(x, p, shortcut):
    # BottleneckCSP: BN over concat + LeakyReLU folded (elementwise-equivalent)
    # into the cv2 / cv3 kernels.
    y1 = apply_Conv(x, p["cv1"], 1)
    for bp in p["m"]:
        y1 = apply_Bottleneck(y1, bp, shortcut)
    y1 = conv2d(y1, p["cv3"], stride=1, act="leaky", scale=BN_SCALE)
    y2 = conv2d(x, p["cv2"], stride=1, act="leaky", scale=BN_SCALE)
    y = jnp.concatenate([y1, y2], axis=-1)
    return apply_Conv(y, p["cv4"], 1)


def apply_Focus(x, p):
    y = jnp.concatenate([x[:, :, ::2, ::2, :], x[:, :, 1::2, ::2, :],
                         x[:, :, ::2, 1::2, :], x[:, :, 1::2, 1::2, :]],
                        axis=-1)
    return apply_Conv(y, p["conv"], 1)


def apply_SPP(x, p):
    # SPPF-style cascade: pool9 = pool5(pool5), pool13 = pool5(pool5(pool5)) -
    # exactly equivalent to the 5/9/13 stride-1 'same' max pools.
    x = apply_Conv(x, p["cv1"], 1)
    p5 = maxpool5_same(x)
    p9 = maxpool5_same(p5)
    p13 = maxpool5_same(p9)
    y = jnp.concatenate([x, p5, p9, p13], axis=-1)
    return apply_Conv(y, p["cv2"], 1)


def apply_Detect(xs, p, nc=16, na=3):
    # training-mode Detect: raw per-level predictions (bs, na, ny, nx, no)
    no = nc + 5
    outs = []
    for xi, mp in zip(xs, p["m"]):
        y = conv2d(xi, mp, stride=1, act="none", scale=1.0,
                   out_dtype=jnp.float32)
        _, N, H, W, _ = y.shape
        outs.append(y[0].reshape(N, H, W, na, no).transpose(0, 3, 1, 2, 4))
    return outs


def apply_seghead(x, p):
    # x: (1, N, H, W, 256) - the first conv broadcasts it to both head groups
    # (G=2) via its index_map; everything downstream runs fused with G=2.
    x = apply_Conv(x, p["c0"], 1)
    x = upsample2(x)
    x = apply_C3(x, p["c3a"], shortcut=False)
    x = apply_Conv(x, p["c1"], 1)
    x = upsample2(x)
    x = apply_Conv(x, p["c2"], 1)
    x = apply_C3(x, p["c3b"], shortcut=False)
    x = upsample2(x)
    x = apply_Conv(x, p["c3"], 1, out_dtype=jnp.float32)
    return x


# ----------------------------------------------------------------------------
# Full YOLOP_mod forward
# ----------------------------------------------------------------------------
def yolop_forward(x, P, bdd=False):
    b1 = P["bb1"]
    x1 = apply_Focus(x, b1["focus"])
    x1 = apply_Conv(x1, b1["conv1"], 2)
    x1 = apply_C3(x1, b1["c3_1"], True)
    x1 = apply_Conv(x1, b1["conv2"], 2)
    x_p1 = apply_C3(x1, b1["c3_2"], True)

    b2 = P["bb2"]
    x2 = apply_Conv(x_p1, b2["conv"], 2)
    x_p2 = apply_C3(x2, b2["c3"], True)

    b3 = P["bb3"]
    x3 = apply_Conv(x_p2, b3["conv"], 2)
    x3 = apply_SPP(x3, b3["spp"])
    x3 = apply_C3(x3, b3["c3"], False)
    x_p3 = apply_Conv(x3, b3["conv2"], 1)

    x_p3_up = upsample2(x_p3)
    cat_p3_p2 = jnp.concatenate([x_p3_up, x_p2], axis=-1)
    out_csp = apply_CSP(cat_p3_p2, P["out_csp"], False)
    out_conv = apply_Conv(out_csp, P["out_conv"], 1)
    out_up = upsample2(out_conv)
    cat_out_p1 = jnp.concatenate([x_p1, out_up], axis=-1)

    out1 = apply_C3(cat_out_p1, P["det_p1"], False)
    out2 = apply_Conv(out1, P["det_p2"], 2)
    out3 = jnp.concatenate([out2, out_conv], axis=-1)
    out4 = apply_C3(out3, P["det_p4"], False)
    out5 = apply_Conv(out4, P["det_p5"], 2)
    out6 = jnp.concatenate([out5, x_p3], axis=-1)
    out7 = apply_C3(out6, P["det_p7"], False)

    detections = None if bdd else apply_Detect([out1, out4, out7],
                                               P["det_out"], nc=16)

    # lane + drivable-area heads fused (group axis G=2 in every pallas_call);
    # the shared G=1 input is broadcast inside the first seg conv.
    seg = apply_seghead(cat_out_p1, P["seg"])      # (2, N, H, W, 2) f32
    lane = jnp.transpose(seg[0], (0, 3, 1, 2))     # NCHW like PyTorch
    driv = jnp.transpose(seg[1], (0, 3, 1, 2))
    return detections, lane, driv


# ----------------------------------------------------------------------------
if __name__ == "__main__":
    kg = KeyGen(0)
    params = init_yolop(kg)

    # small but valid input: H, W must be multiples of 64 (5 stride-2 stages)
    x_nchw = jax.random.normal(jax.random.PRNGKey(0), (2, 3, 64, 64),
                               jnp.float32)
    # NCHW -> internal (G=1, N, H, W, C) bf16
    x = jnp.transpose(x_nchw, (0, 2, 3, 1)).astype(jnp.bfloat16)[None]

    det, lane, driv = yolop_forward(x, params, bdd=False)
    jax.block_until_ready((det, lane, driv))

    assert lane.shape == (2, 2, 64, 64), lane.shape
    assert driv.shape == (2, 2, 64, 64), driv.shape
    assert det[0].shape == (2, 3, 8, 8, 21), det[0].shape
    assert det[1].shape == (2, 3, 4, 4, 21), det[1].shape
    assert det[2].shape == (2, 3, 2, 2, 21), det[2].shape
    assert lane.dtype == jnp.float32 and det[0].dtype == jnp.float32
    assert bool(jnp.all(jnp.isfinite(lane))) and bool(jnp.all(jnp.isfinite(det[0])))

    print("KERNEL_OK")
</pallas_src>

<mosaic_0001>
module attributes {stable_mosaic.version = 11 : i64} {
  func.func @_mm_kernel(%arg0: i32, %arg1: i32, %arg2: i32, %arg3: memref<1x512x108xbf16, #tpu.memory_space<vmem>>, %arg4: memref<1x108x32xbf16, #tpu.memory_space<vmem>>, %arg5: memref<1x512x32xbf16, #tpu.memory_space<vmem>>) attributes {dimension_semantics = [#tpu.dimension_semantics<parallel>, #tpu.dimension_semantics<parallel>, #tpu.dimension_semantics<parallel>], iteration_bounds = array<i64: 1, 4, 1>, scalar_prefetch = 0 : i64, scratch_operands = 0 : i64, tpu.core_type = #tpu.core_type<tc>, window_params = [{transform_indices = @transform_0, window_bounds = array<i64: 1, 512, 108>}, {transform_indices = @transform_1, window_bounds = array<i64: 1, 108, 32>}, {transform_indices = @transform_2, window_bounds = array<i64: 1, 512, 32>}]} {
    %c0 = arith.constant 0 : index
    %c0_0 = arith.constant 0 : index
    %c0_1 = arith.constant 0 : index
    %0 = vector.load %arg3[%c0, %c0_0, %c0_1] : memref<1x512x108xbf16, #tpu.memory_space<vmem>>, vector<1x512x108xbf16>
    %1 = vector.shape_cast %0 : vector<1x512x108xbf16> to vector<512x108xbf16>
    %c0_2 = arith.constant 0 : index
    %c0_3 = arith.constant 0 : index
    %c0_4 = arith.constant 0 : index
    %2 = vector.load %arg4[%c0_2, %c0_3, %c0_4] : memref<1x108x32xbf16, #tpu.memory_space<vmem>>, vector<1x108x32xbf16>
    %3 = vector.shape_cast %2 : vector<1x108x32xbf16> to vector<108x32xbf16>
    %cst = arith.constant dense<0.000000e+00> : vector<512x32xf32>
    %4 = tpu.matmul %1, %3, %cst {dimension_numbers = #tpu.dot_dimension_numbers<[1], [0], [0], [1], [0, 0, 1, 1], [], []>} : vector<512x108xbf16>, vector<108x32xbf16>, vector<512x32xf32> -> vector<512x32xf32>
    %cst_5 = arith.constant 0.999500393 : f32
    %5 = vector.broadcast %cst_5 : f32 to vector<512x32xf32>
    %6 = arith.mulf %4, %5 : vector<512x32xf32>
    %cst_6 = arith.constant 3.000000e+00 : f32
    %7 = vector.broadcast %cst_6 : f32 to vector<512x32xf32>
    %8 = arith.addf %6, %7 : vector<512x32xf32>
    %cst_7 = arith.constant 0.000000e+00 : f32
    %cst_8 = arith.constant 6.000000e+00 : f32
    %9 = vector.broadcast %cst_7 : f32 to vector<512x32xf32>
    %10 = arith.maximumf %9, %8 : vector<512x32xf32>
    %11 = vector.broadcast %cst_8 : f32 to vector<512x32xf32>
    %12 = arith.minimumf %11, %10 : vector<512x32xf32>
    %13 = arith.mulf %6, %12 : vector<512x32xf32>
    %cst_9 = arith.constant 0.166666672 : f32
    %14 = vector.broadcast %cst_9 : f32 to vector<512x32xf32>
    %15 = arith.mulf %13, %14 : vector<512x32xf32>
    %16 = arith.truncf %15 : vector<512x32xf32> to vector<512x32xbf16>
    %c0_10 = arith.constant 0 : index
    %c0_11 = arith.constant 0 : index
    %c0_12 = arith.constant 0 : index
    %17 = vector.load %arg5[%c0_10, %c0_11, %c0_12] : memref<1x512x32xbf16, #tpu.memory_space<vmem>>, vector<1x512x32xbf16>
    %18 = vector.shape_cast %17 : vector<1x512x32xbf16> to vector<512x32xbf16>
    %19 = vector.shape_cast %16 : vector<512x32xbf16> to vector<1x512x32xbf16>
    tpu.vector_store %arg5[%c0_10, %c0_11, %c0_12], %19 {strides = array<i32>} : memref<1x512x32xbf16, #tpu.memory_space<vmem>>, vector<1x512x32xbf16>,
    return
  }
  func.func @transform_0(%arg0: i32, %arg1: i32, %arg2: i32) -> (i32, i32, i32) {
    %c0_i32 = arith.constant 0 : i32
    %c0_i32_0 = arith.constant 0 : i32
    return %arg0, %arg1, %c0_i32 : i32, i32, i32
  }
  func.func @transform_1(%arg0: i32, %arg1: i32, %arg2: i32) -> (i32, i32, i32) {
    %c0_i32 = arith.constant 0 : i32
    %c0_i32_0 = arith.constant 0 : i32
    return %arg0, %c0_i32, %arg2 : i32, i32, i32
  }
  func.func @transform_2(%arg0: i32, %arg1: i32, %arg2: i32) -> (i32, i32, i32) {
    %c0_i32 = arith.constant 0 : i32
    return %arg0, %arg1, %arg2 : i32, i32, i32
  }
}

</mosaic_0001>

<llo_original>
// kernel: tpu_custom_call.1
$region0: #{tpu_custom_call.1}
  #allocation0 [shape = 'u32[]', space=smem, size = 0x4, offset = 0x4, fixed_abs, tag = 'smem constant byte address 0x4 - core index']
  #allocation1 [shape = 'u32[144,128]{1,0:T(1,128)}', space=vmem, size = 0x12000, scoped, tag = 'internal scratch']
  %s0 = inlined_call_operand.vmem [shape: bf16[1,2048,108], index: 0, kind: input, shape index: {}]
  %s1 = inlined_call_operand.vmem [shape: bf16[1,108,32], index: 1, kind: input, shape index: {}]
  %s2 = inlined_call_operand.vmem [shape: bf16[1,2048,32], index: 2, kind: output, shape index: {}]
  %s3 = sld [smem:[#allocation0]]
  $region41: #{tpu_custom_call.1} parent=0
    _
  %s5 = ssub.s32 1, %s3
  %s6 = scalar_select 0, %s5, %s3
  loop: start=0, step=1, limit=6
  $region2: #{tpu_custom_call.1} parent=0 // loop_pre_header
    _
  $region3: #{tpu_custom_call.1} parent=0 // loop_header
    %s8 = sphi 0, %s12
    %p9 = scmp.ge.s32.totalorder %s8, 6
    %s15 = sphi 0, %s34
    %s16 = sphi 0, %s30
    %s17 = sphi 0, %s26
    %s18 = sphi 0, %s15
    %s19 = sphi 0, %s16
    %s20 = sphi 0, %s17
    %s21 = sphi 0, %s18
    %s22 = sphi 0, %s19
    %s23 = sphi 0, %s20
    %s39 = sphi 0, %s41
    %s42 = sphi 0, %s39
    %s43 = sphi 0, %s42
    %s59 = sphi 0, %s43
    %s67 = sphi 0, %s69
    %s70 = sphi 0, %s67
    %s71 = sphi 0, %s70
    %s87 = sphi 0, %s71
    %s97 = sphi 0, %s99
    %s100 = sphi 0, %s97
    %s101 = sphi 0, %s100
    %s117 = sphi 0, %s101
  $region4: #{tpu_custom_call.1} parent=0 // loop_header_branch
    %11 = sbr.rel (%p9) target = $region8
  $region5: #{tpu_custom_call.1} parent=0 // loop_body
    %s13 = ssub.s32 %s8, 1
    %s14 = ssub.s32 %s8, 2
    %s24 = sadd.s32 1, %s17
    %p25 = scmp.ge.s32.totalorder %s24, 1
    %s26 = scalar_select %p25, 0, %s24
    %s27 = sadd.s32 1, %s16
    %s28 = scalar_select %p25, %s27, %s16
    %p29 = scmp.ge.s32.totalorder %s28, 4
    %s30 = scalar_select %p29, 0, %s28
    %s31 = sadd.s32 1, %s15
    %s32 = scalar_select %p29, %s31, %s15
    %p33 = scmp.ge.s32.totalorder %s32, 1
    %s34 = scalar_select %p33, 0, %s32
    %s35 = ssub.s32 %s15, %s34
    %s36 = ssub.s32 %s16, %s30
    %s37 = sor.u32 %s35, %s36
    %p38 = scmp.eq.s32.totalorder %s37, 0
    %s40 = sadd.s32 %s39, 1
    %s41 = scalar_select %p38, %s39, %s40
    %p44 = pneg %p38
    %p45 = scmp.eq.s32.totalorder %s8, 3
    %p46 = por %p44, %p45
    %p47 = scmp.ne.s32.totalorder %s39, %s42
    %p48 = scmp.eq.s32.totalorder %s8, 0
    %p49 = por %p47, %p48
    %p50 = scmp.ne.s32.totalorder %s39, %s42
    %p51 = scmp.eq.s32.totalorder %s13, 3
    %p52 = por %p50, %p51
    %p53 = scmp.ne.s32.totalorder %s42, %s43
    %p54 = scmp.eq.s32.totalorder %s13, 0
    %p55 = por %p53, %p54
    %p56 = scmp.ne.s32.totalorder %s42, %s43
    %p57 = scmp.eq.s32.totalorder %s14, 3
    %p58 = por %p56, %p57
    %p60 = scmp.ne.s32.totalorder %s43, %s59
    %p61 = scmp.eq.s32.totalorder %s14, 0
    %p62 = por %p60, %p61
    %s63 = ssub.s32 %s15, %s34
    %s64 = ssub.s32 %s17, %s26
    %s65 = sor.u32 %s63, %s64
    %p66 = scmp.eq.s32.totalorder %s65, 0
    %s68 = sadd.s32 %s67, 1
    %s69 = scalar_select %p66, %s67, %s68
    %p72 = pneg %p66
    %p73 = scmp.eq.s32.totalorder %s8, 3
    %p74 = por %p72, %p73
    %p75 = scmp.ne.s32.totalorder %s67, %s70
    %p76 = scmp.eq.s32.totalorder %s8, 0
    %p77 = por %p75, %p76
    %p78 = scmp.ne.s32.totalorder %s67, %s70
    %p79 = scmp.eq.s32.totalorder %s13, 3
    %p80 = por %p78, %p79
    %p81 = scmp.ne.s32.totalorder %s70, %s71
    %p82 = scmp.eq.s32.totalorder %s13, 0
    %p83 = por %p81, %p82
    %p84 = scmp.ne.s32.totalorder %s70, %s71
    %p85 = scmp.eq.s32.totalorder %s14, 3
    %p86 = por %p84, %p85
    %p88 = scmp.ne.s32.totalorder %s71, %s87
    %p89 = scmp.eq.s32.totalorder %s14, 0
    %p90 = por %p88, %p89
    %s91 = ssub.s32 %s15, %s34
    %s92 = ssub.s32 %s16, %s30
    %s93 = sor.u32 %s91, %s92
    %s94 = ssub.s32 %s17, %s26
    %s95 = sor.u32 %s93, %s94
    %p96 = scmp.eq.s32.totalorder %s95, 0
    %s98 = sadd.s32 %s97, 1
    %s99 = scalar_select %p96, %s97, %s98
    %p102 = pneg %p96
    %p103 = scmp.eq.s32.totalorder %s8, 3
    %p104 = por %p102, %p103
    %p105 = scmp.ne.s32.totalorder %s97, %s100
    %p106 = scmp.eq.s32.totalorder %s8, 0
    %p107 = por %p105, %p106
    %p108 = scmp.ne.s32.totalorder %s97, %s100
    %p109 = scmp.eq.s32.totalorder %s13, 3
    %p110 = por %p108, %p109
    %p111 = scmp.ne.s32.totalorder %s100, %s101
    %p112 = scmp.eq.s32.totalorder %s13, 0
    %p113 = por %p111, %p112
    %p114 = scmp.ne.s32.totalorder %s100, %s101
    %p115 = scmp.eq.s32.totalorder %s14, 3
    %p116 = por %p114, %p115
    %p118 = scmp.ne.s32.totalorder %s101, %s117
    %p119 = scmp.eq.s32.totalorder %s14, 0
    %p120 = por %p118, %p119
    %p121 = scmp.le.s32.totalorder 1, %s8
    %p122 = scmp.lt.s32.totalorder %s8, 5
    %p123 = pnand %p121, %p122
    %p124 = pneg %p123
    // Predicated region
    $region9: #{tpu_custom_call.1} parent=5 // pred_check
      _
    $region10: #{tpu_custom_call.1} parent=5 // pred_check_branch
      %126 = sbr.rel (%p123) target = $region12
    $region11: #{tpu_custom_call.1} parent=5 // pred_region
      %s127 = ssub.s32 %s8, 1
      // Predicated region
      $region13: #{tpu_custom_call.1} parent=11 // pred_check
        %p128 = pneg %p83
      $region14: #{tpu_custom_call.1} parent=11 // pred_check_branch
        %130 = sbr.rel (%p128) target = $region16
      $region15: #{tpu_custom_call.1} parent=11 // pred_region
        %p131 = scmp.lt.s32.totalorder %s18, 0
        %s132 = scalar_select %p131, %s18, 0
        %p133 = scmp.lt.s32.totalorder %s20, 0
        %s134 = scalar_select %p133, %s20, 0
        %s135 = smul.addr %s132, 14
        %s136 = sadd.s32 %s134, %s135
        %s137 = smul.addr %s136, 4
        %s138 = scalar_lea.vmem %s1, %s137
      $region16: #{tpu_custom_call.1} parent=11 // pred_fallthru
        _
    $region12: #{tpu_custom_call.1} parent=5 // pred_fallthru
      _
    %p139 = scmp.lt.s32.totalorder %s8, 4
    // Predicated region
    $region17: #{tpu_custom_call.1} parent=5 // pred_check
      %p140 = pneg %p139
    $region18: #{tpu_custom_call.1} parent=5 // pred_check_branch
      %142 = sbr.rel (%p140) target = $region20
    $region19: #{tpu_custom_call.1} parent=5 // pred_region
      // Predicated region
      $region21: #{tpu_custom_call.1} parent=19 // pred_check
        %p143 = pneg %p49
      $region22: #{tpu_custom_call.1} parent=19 // pred_check_branch
        %145 = sbr.rel (%p143) target = $region24
      $region23: #{tpu_custom_call.1} parent=19 // pred_region
        %s146 = smul.u32 64, %s16
        %p147 = scmp.lt.s32.totalorder %s15, 0
        %s148 = scalar_select %p147, %s15, 0
        %p149 = scmp.lt.s32.totalorder %s146, 255
        %s150 = scalar_select %p149, %s146, 255
        %s151 = smul.addr %s148, 256
        %s152 = sadd.s32 %s150, %s151
        %s153 = smul.addr %s152, 4
        %s154 = scalar_lea.vmem %s0, %s153
        %s155 = smul.u32 64, %s16
      $region24: #{tpu_custom_call.1} parent=19 // pred_fallthru
        _
    $region20: #{tpu_custom_call.1} parent=5 // pred_fallthru
      _
    %p156 = scmp.le.s32.totalorder 1, %s8
    %p157 = scmp.lt.s32.totalorder %s8, 5
    %p158 = pnand %p156, %p157
    %p159 = pneg %p158
    // Predicated region
    $region25: #{tpu_custom_call.1} parent=5 // pred_check
      _
    $region26: #{tpu_custom_call.1} parent=5 // pred_check_branch
      %161 = sbr.rel (%p158) target = $region28
    $region27: #{tpu_custom_call.1} parent=5 // pred_region
      %s162 = ssub.s32 %s8, 1
      %s163 = smul.u32 64, %s19
      %p164 = scmp.lt.s32.totalorder %s18, 0
      %s165 = scalar_select %p164, %s18, 0
      %p166 = scmp.lt.s32.totalorder %s163, 255
      %s167 = scalar_select %p166, %s163, 255
      %s168 = smul.addr %s165, 256
      %s169 = sadd.s32 %s167, %s168
      %s170 = smul.addr %s169, 4
      %s171 = scalar_lea.vmem %s0, %s170
      %p172 = pneg %p55
      %p173 = pneg %p52
      %p174 = scmp.lt.s32.totalorder %s18, 0
      %s175 = scalar_select %p174, %s18, 0
      %p176 = scmp.lt.s32.totalorder %s20, 0
      %s177 = scalar_select %p176, %s20, 0
      %s178 = smul.addr %s175, 14
      %s179 = sadd.s32 %s177, %s178
      %s180 = smul.addr %s179, 4
      %s181 = scalar_lea.vmem %s1, %s180
      %p182 = pneg %p83
      %p183 = pneg %p80
      %p184 = pneg %p113
      %p185 = pneg %p110
      %s186 = smul.u32 64, %s19
      %p187 = scmp.lt.s32.totalorder %s18, 0
      %s188 = scalar_select %p187, %s18, 0
      %p189 = scmp.lt.s32.totalorder %s186, 255
      %s190 = scalar_select %p189, %s186, 255
      %p191 = scmp.lt.s32.totalorder %s20, 0
      %s192 = scalar_select %p191, %s20, 0
      %s193 = sadd.s32 %s192, %s190
      %s194 = smul.addr %s188, 256
      %s195 = sadd.s32 %s193, %s194
      %s196 = smul.addr %s195, 4
      %s197 = scalar_lea.vmem %s2, %s196
      %s198 = smul.u32 64, %s19
      %p199 = scmp.lt.s32.totalorder %s18, 0
      %s200 = scalar_select %p199, %s18, 0
      %p201 = scmp.lt.s32.totalorder %s198, 255
      %s202 = scalar_select %p201, %s198, 255
      %s203 = smul.addr %s200, 256
      %s204 = sadd.s32 %s202, %s203
      %s205 = smul.addr %s204, 4
      %s206 = scalar_lea.vmem %s0, %s205
      %s207 = smul.u32 64, %s19
      %p208 = scmp.lt.s32.totalorder %s18, 0
      %s209 = scalar_select %p208, %s18, 0
      %p210 = scmp.lt.s32.totalorder %s20, 0
      %s211 = scalar_select %p210, %s20, 0
      %s212 = smul.addr %s209, 14
      %s213 = sadd.s32 %s211, %s212
      %s214 = smul.addr %s213, 4
      %s215 = scalar_lea.vmem %s1, %s214
      %s216 = smul.u32 64, %s19
      %p217 = scmp.lt.s32.totalorder %s18, 0
      %s218 = scalar_select %p217, %s18, 0
      %p219 = scmp.lt.s32.totalorder %s216, 255
      %s220 = scalar_select %p219, %s216, 255
      %p221 = scmp.lt.s32.totalorder %s20, 0
      %s222 = scalar_select %p221, %s20, 0
      %s223 = sadd.s32 %s222, %s220
      %s224 = smul.addr %s218, 256
      %s225 = sadd.s32 %s223, %s224
      %s226 = smul.addr %s225, 4
      %s227 = scalar_lea.vmem %s2, %s226
      %s228 = smul.u32 64, %s19
      %v230 = vld [vmem:[%s206] sm:$0xf]
      %v231 = vld [vmem:[%s206 + $0x4] sm:$0xf]
      %v232 = vld [vmem:[%s206 + $0x8] sm:$0xf]
      %v233 = vld [vmem:[%s206 + $0xc] sm:$0xf]
      %v234 = vld [vmem:[%s206 + $0x10] sm:$0xf]
      %v235 = vld [vmem:[%s206 + $0x14] sm:$0xf]
      %v236 = vld [vmem:[%s206 + $0x18] sm:$0xf]
      %v237 = vld [vmem:[%s206 + $0x1c] sm:$0xf]
      %v238 = vld [vmem:[%s206 + $0x20] sm:$0xf]
      %v239 = vld [vmem:[%s206 + $0x24] sm:$0xf]
      %v240 = vld [vmem:[%s206 + $0x28] sm:$0xf]
      %v241 = vld [vmem:[%s206 + $0x2c] sm:$0xf]
      %v242 = vld [vmem:[%s206 + $0x30] sm:$0xf]
      %v243 = vld [vmem:[%s206 + $0x34] sm:$0xf]
      %v244 = vld [vmem:[%s206 + $0x38] sm:$0xf]
      %v245 = vld [vmem:[%s206 + $0x3c] sm:$0xf]
      %v246 = vld [vmem:[%s206 + $0x40] sm:$0xf]
      %v247 = vld [vmem:[%s206 + $0x44] sm:$0xf]
      %v248 = vld [vmem:[%s206 + $0x48] sm:$0xf]
      %v249 = vld [vmem:[%s206 + $0x4c] sm:$0xf]
      %v250 = vld [vmem:[%s206 + $0x50] sm:$0xf]
      %v251 = vld [vmem:[%s206 + $0x54] sm:$0xf]
      %v252 = vld [vmem:[%s206 + $0x58] sm:$0xf]
      %v253 = vld [vmem:[%s206 + $0x5c] sm:$0xf]
      %v254 = vld [vmem:[%s206 + $0x60] sm:$0xf]
      %v255 = vld [vmem:[%s206 + $0x64] sm:$0xf]
      %v256 = vld [vmem:[%s206 + $0x68] sm:$0xf]
      %v257 = vld [vmem:[%s206 + $0x6c] sm:$0xf]
      %v258 = vld [vmem:[%s206 + $0x70] sm:$0xf]
      %v259 = vld [vmem:[%s206 + $0x74] sm:$0xf]
      %v260 = vld [vmem:[%s206 + $0x78] sm:$0xf]
      %v261 = vld [vmem:[%s206 + $0x7c] sm:$0xf]
      %v262 = vld [vmem:[%s206 + $0x80] sm:$0xf]
      %v263 = vld [vmem:[%s206 + $0x84] sm:$0xf]
      %v264 = vld [vmem:[%s206 + $0x88] sm:$0xf]
      %v265 = vld [vmem:[%s206 + $0x8c] sm:$0xf]
      %v266 = vld [vmem:[%s206 + $0x90] sm:$0xf]
      %v267 = vld [vmem:[%s206 + $0x94] sm:$0xf]
      %v268 = vld [vmem:[%s206 + $0x98] sm:$0xf]
      %v269 = vld [vmem:[%s206 + $0x9c] sm:$0xf]
      %v270 = vld [vmem:[%s206 + $0xa0] sm:$0xf]
      %v271 = vld [vmem:[%s206 + $0xa4] sm:$0xf]
      %v272 = vld [vmem:[%s206 + $0xa8] sm:$0xf]
      %v273 = vld [vmem:[%s206 + $0xac] sm:$0xf]
      %v274 = vld [vmem:[%s206 + $0xb0] sm:$0xf]
      %v275 = vld [vmem:[%s206 + $0xb4] sm:$0xf]
      %v276 = vld [vmem:[%s206 + $0xb8] sm:$0xf]
      %v277 = vld [vmem:[%s206 + $0xbc] sm:$0xf]
      %v278 = vld [vmem:[%s206 + $0xc0] sm:$0xf]
      %v279 = vld [vmem:[%s206 + $0xc4] sm:$0xf]
      %v280 = vld [vmem:[%s206 + $0xc8] sm:$0xf]
      %v281 = vld [vmem:[%s206 + $0xcc] sm:$0xf]
      %v282 = vld [vmem:[%s206 + $0xd0] sm:$0xf]
      %v283 = vld [vmem:[%s206 + $0xd4] sm:$0xf]
      %v284 = vld [vmem:[%s206 + $0xd8] sm:$0xf]
      %v285 = vld [vmem:[%s206 + $0xdc] sm:$0xf]
      %v286 = vld [vmem:[%s206 + $0xe0] sm:$0xf]
      %v287 = vld [vmem:[%s206 + $0xe4] sm:$0xf]
      %v288 = vld [vmem:[%s206 + $0xe8] sm:$0xf]
      %v289 = vld [vmem:[%s206 + $0xec] sm:$0xf]
      %v290 = vld [vmem:[%s206 + $0xf0] sm:$0xf]
      %v291 = vld [vmem:[%s206 + $0xf4] sm:$0xf]
      %v292 = vld [vmem:[%s206 + $0xf8] sm:$0xf]
      %v293 = vld [vmem:[%s206 + $0xfc] sm:$0xf]
      %v294 = vld [vmem:[%s215] sm:$0xf]
      %v295 = vld [vmem:[%s215 + $0x4] sm:$0xf]
      %v296 = vld [vmem:[%s215 + $0x8] sm:$0xf]
      %v297 = vld [vmem:[%s215 + $0xc] sm:$0xf]
      %v298 = vld [vmem:[%s215 + $0x10] sm:$0xf]
      %v299 = vld [vmem:[%s215 + $0x14] sm:$0xf]
      %v300 = vld [vmem:[%s215 + $0x18] sm:$0xf]
      %v301 = vld [vmem:[%s215 + $0x1c] sm:$0xf]
      %v302 = vld [vmem:[%s215 + $0x20] sm:$0xf]
      %v303 = vld [vmem:[%s215 + $0x24] sm:$0xf]
      %v304 = vld [vmem:[%s215 + $0x28] sm:$0xf]
      %v305 = vld [vmem:[%s215 + $0x2c] sm:$0xf]
      %v306 = vld [vmem:[%s215 + $0x30] sm:$0xf]
      %v307 = vld [vmem:[%s215 + $0x34] sm:$0x3]
      %v372 = vunpack.c.l.b16 %v230
      %v373 = vunpack.c.l.b16 %v231
      %v374 = vunpack.c.l.b16 %v232
      %v375 = vunpack.c.l.b16 %v233
      %v376 = vunpack.c.l.b16 %v234
      %v377 = vunpack.c.l.b16 %v235
      %v378 = vunpack.c.l.b16 %v236
      %v379 = vunpack.c.l.b16 %v237
      %v380 = vunpack.c.l.b16 %v238
      %v381 = vunpack.c.l.b16 %v239
      %v382 = vunpack.c.l.b16 %v240
      %v383 = vunpack.c.l.b16 %v241
      %v384 = vunpack.c.l.b16 %v242
      %v385 = vunpack.c.l.b16 %v243
      %v386 = vunpack.c.l.b16 %v244
      %v387 = vunpack.c.l.b16 %v245
      %v388 = vunpack.c.l.b16 %v246
      %v389 = vunpack.c.l.b16 %v247
      %v390 = vunpack.c.l.b16 %v248
      %v391 = vunpack.c.l.b16 %v249
      %v392 = vunpack.c.l.b16 %v250
      %v393 = vunpack.c.l.b16 %v251
      %v394 = vunpack.c.l.b16 %v252
      %v395 = vunpack.c.l.b16 %v253
      %v396 = vunpack.c.l.b16 %v254
      %v397 = vunpack.c.l.b16 %v255
      %v398 = vunpack.c.l.b16 %v256
      %v399 = vunpack.c.l.b16 %v257
      %v400 = vunpack.c.l.b16 %v258
      %v401 = vunpack.c.l.b16 %v259
      %v402 = vunpack.c.l.b16 %v260
      %v403 = vunpack.c.l.b16 %v261
      %v404 = vunpack.c.l.b16 %v262
      %v405 = vunpack.c.l.b16 %v263
      %v406 = vunpack.c.l.b16 %v264
      %v407 = vunpack.c.l.b16 %v265
      %v408 = vunpack.c.l.b16 %v266
      %v409 = vunpack.c.l.b16 %v267
      %v410 = vunpack.c.l.b16 %v268
      %v411 = vunpack.c.l.b16 %v269
      %v412 = vunpack.c.l.b16 %v270
      %v413 = vunpack.c.l.b16 %v271
      %v414 = vunpack.c.l.b16 %v272
      %v415 = vunpack.c.l.b16 %v273
      %v416 = vunpack.c.l.b16 %v274
      %v417 = vunpack.c.l.b16 %v275
      %v418 = vunpack.c.l.b16 %v276
      %v419 = vunpack.c.l.b16 %v277
      %v420 = vunpack.c.l.b16 %v278
      %v421 = vunpack.c.l.b16 %v279
      %v422 = vunpack.c.l.b16 %v280
      %v423 = vunpack.c.l.b16 %v281
      %v424 = vunpack.c.l.b16 %v282
      %v425 = vunpack.c.l.b16 %v283
      %v426 = vunpack.c.l.b16 %v284
      %v427 = vunpack.c.l.b16 %v285
      %v428 = vunpack.c.l.b16 %v286
      %v429 = vunpack.c.l.b16 %v287
      %v430 = vunpack.c.l.b16 %v288
      %v431 = vunpack.c.l.b16 %v289
      %v432 = vunpack.c.l.b16 %v290
      %v433 = vunpack.c.l.b16 %v291
      %v434 = vunpack.c.l.b16 %v292
      %v435 = vunpack.c.l.b16 %v293
      %v436 = vpack.c.b16 %v373, %v372
      %v437 = vpack.c.b16 %v375, %v374
      %v438 = vpack.c.b16 %v377, %v376
      %v439 = vpack.c.b16 %v379, %v378
      %v440 = vpack.c.b16 %v381, %v380
      %v441 = vpack.c.b16 %v383, %v382
      %v442 = vpack.c.b16 %v385, %v384
      %v443 = vpack.c.b16 %v387, %v386
      %v444 = vpack.c.b16 %v389, %v388
      %v445 = vpack.c.b16 %v391, %v390
      %v446 = vpack.c.b16 %v393, %v392
      %v447 = vpack.c.b16 %v395, %v394
      %v448 = vpack.c.b16 %v397, %v396
      %v449 = vpack.c.b16 %v399, %v398
      %v450 = vpack.c.b16 %v401, %v400
      %v451 = vpack.c.b16 %v403, %v402
      %v452 = vpack.c.b16 %v405, %v404
      %v453 = vpack.c.b16 %v407, %v406
      %v454 = vpack.c.b16 %v409, %v408
      %v455 = vpack.c.b16 %v411, %v410
      %v456 = vpack.c.b16 %v413, %v412
      %v457 = vpack.c.b16 %v415, %v414
      %v458 = vpack.c.b16 %v417, %v416
      %v459 = vpack.c.b16 %v419, %v418
      %v460 = vpack.c.b16 %v421, %v420
      %v461 = vpack.c.b16 %v423, %v422
      %v462 = vpack.c.b16 %v425, %v424
      %v463 = vpack.c.b16 %v427, %v426
      %v464 = vpack.c.b16 %v429, %v428
      %v465 = vpack.c.b16 %v431, %v430
      %v466 = vpack.c.b16 %v433, %v432
      %v467 = vpack.c.b16 %v435, %v434
      %v482 = vunpack.c.l.b16 %v294
      %v483 = vunpack.c.l.b16 %v295
      %v484 = vunpack.c.l.b16 %v296
      %v485 = vunpack.c.l.b16 %v297
      %v486 = vunpack.c.l.b16 %v298
      %v487 = vunpack.c.l.b16 %v299
      %v488 = vunpack.c.l.b16 %v300
      %v489 = vunpack.c.l.b16 %v301
      %v490 = vunpack.c.l.b16 %v302
      %v491 = vunpack.c.l.b16 %v303
      %v492 = vunpack.c.l.b16 %v304
      %v493 = vunpack.c.l.b16 %v305
      %v494 = vunpack.c.l.b16 %v306
      %v495 = vunpack.c.l.b16 %v307
      %v496 = vpack.c.b16 %v483, %v482
      %v497 = vpack.c.b16 %v485, %v484
      %v498 = vpack.c.b16 %v487, %v486
      %v499 = vpack.c.b16 %v489, %v488
      %v500 = vpack.c.b16 %v491, %v490
      %v501 = vpack.c.b16 %v493, %v492
      %v502 = vpack.c.b16 %v495, %v494
      %vm509 = vcmask 883712
      %v511 = vsel %vm509, %v436, 0
      %v514 = vsel %vm509, %v437, 0
      %v517 = vsel %vm509, %v438, 0
      %v520 = vsel %vm509, %v439, 0
      %v523 = vsel %vm509, %v440, 0
      %v526 = vsel %vm509, %v441, 0
      %v529 = vsel %vm509, %v442, 0
      %v532 = vsel %vm509, %v443, 0
      %v535 = vsel %vm509, %v444, 0
      %v538 = vsel %vm509, %v445, 0
      %v541 = vsel %vm509, %v446, 0
      %v544 = vsel %vm509, %v447, 0
      %v547 = vsel %vm509, %v448, 0
      %v550 = vsel %vm509, %v449, 0
      %v553 = vsel %vm509, %v450, 0
      %v556 = vsel %vm509, %v451, 0
      %v559 = vsel %vm509, %v452, 0
      %v562 = vsel %vm509, %v453, 0
      %v565 = vsel %vm509, %v454, 0
      %v568 = vsel %vm509, %v455, 0
      %v571 = vsel %vm509, %v456, 0
      %v574 = vsel %vm509, %v457, 0
      %v577 = vsel %vm509, %v458, 0
      %v580 = vsel %vm509, %v459, 0
      %v583 = vsel %vm509, %v460, 0
      %v586 = vsel %vm509, %v461, 0
      %v589 = vsel %vm509, %v462, 0
      %v592 = vsel %vm509, %v463, 0
      %v595 = vsel %vm509, %v464, 0
      %v598 = vsel %vm509, %v465, 0
      %v601 = vsel %vm509, %v466, 0
      %v604 = vsel %vm509, %v467, 0
      %vm606 = vcmask 1045504
      %v608 = vsel %vm606, %v502, 0
      %610 = vmatprep.subr.bf16.mxu0 0
      %611 = vmatpush1.bf16.msra.mxu0 %v496
      %612 = vmatprep.subr.bf16.mxu0 0
      %613 = vmatpush1.bf16.msra.mxu0 %v497
      %614 = vmatprep.subr.bf16.mxu0 0
      %615 = vmatpush1.bf16.msra.mxu0 %v498
      %616 = vmatprep.subr.bf16.mxu0 0
      %617 = vmatpush1.bf16.msra.mxu0 %v499
      %618 = vmatprep.subr.bf16.mxu0 0
      %619 = vmatpush1.bf16.msra.mxu0 %v500
      %620 = vmatprep.subr.bf16.mxu0 0
      %621 = vmatpush1.bf16.msra.mxu0 %v501
      %622 = vmatprep.subr.bf16.mxu0 0
      %623 = vmatpush1.bf16.msra.mxu0 %v608
      %624 = vmatprep.subr.bf16.mxu0 0
      %625 = vmatpush1.bf16.msra.mxu0 0
      %626 = vmatprep.subr.bf16.mxu0 0
      %627 = vmatpush1.bf16.msra.mxu0 0
      %628 = vmatprep.subr.bf16.mxu0 0
      %629 = vmatpush1.bf16.msra.mxu0 0
      %630 = vmatprep.subr.bf16.mxu0 0
      %631 = vmatpush1.bf16.msra.mxu0 0
      %632 = vmatprep.subr.bf16.mxu0 0
      %633 = vmatpush1.bf16.msra.mxu0 0
      %634 = vmatprep.subr.bf16.mxu0 0
      %635 = vmatpush1.bf16.msra.mxu0 0
      %636 = vmatprep.subr.bf16.mxu0 0
      %637 = vmatpush1.bf16.msra.mxu0 0
      %638 = vmatprep.subr.bf16.mxu0 0
      %639 = vmatpush1.bf16.msra.mxu0 0
      %640 = vmatprep.subr.bf16.mxu0 0
      %641 = vmatpush1.bf16.msra.mxu0 0
      %642 = vmatprep.mubr.bf16.mxu0 0
      %643 = vmatmul.mubr.bf16.gmra.mrb[0].mxu0 %v511
      %v644 = vpop.f32.mrb[0].mxu0
      %v645 = vadd.f32 0.0, %v644
      %v646 = vpop.f32.mrb[0].mxu0
      %v647 = vpop.f32.mrb[0].mxu0
      %v648 = vadd.f32 0.0, %v647
      %v649 = vpop.f32.mrb[0].mxu0
      %650 = vmatprep.mubr.bf16.mxu0 0
      %651 = vmatmul.mubr.bf16.gmra.mrb[0].mxu0 %v514
      %v652 = vpop.f32.mrb[0].mxu0
      %v653 = vadd.f32 0.0, %v652
      %v654 = vpop.f32.mrb[0].mxu0
      %v655 = vpop.f32.mrb[0].mxu0
      %v656 = vadd.f32 0.0, %v655
      %v657 = vpop.f32.mrb[0].mxu0
      %658 = vmatprep.mubr.bf16.mxu0 0
      %659 = vmatmul.mubr.bf16.gmra.mrb[0].mxu0 %v517
      %v660 = vpop.f32.mrb[0].mxu0
      %v661 = vadd.f32 0.0, %v660
      %v662 = vpop.f32.mrb[0].mxu0
      %v663 = vpop.f32.mrb[0].mxu0
      %v664 = vadd.f32 0.0, %v663
      %v665 = vpop.f32.mrb[0].mxu0
      %666 = vmatprep.mubr.bf16.mxu0 0
      %667 = vmatmul.mubr.bf16.gmra.mrb[0].mxu0 %v520
      %v668 = vpop.f32.mrb[0].mxu0
      %v669 = vadd.f32 0.0, %v668
      %v670 = vpop.f32.mrb[0].mxu0
      %v671 = vpop.f32.mrb[0].mxu0
      %v672 = vadd.f32 0.0, %v671
      %v673 = vpop.f32.mrb[0].mxu0
      %674 = vmatprep.mubr.bf16.mxu0 0
      %675 = vmatmul.mubr.bf16.gmra.mrb[0].mxu0 %v523
      %v676 = vpop.f32.mrb[0].mxu0
      %v677 = vadd.f32 0.0, %v676
      %v678 = vpop.f32.mrb[0].mxu0
      %v679 = vpop.f32.mrb[0].mxu0
      %v680 = vadd.f32 0.0, %v679
      %v681 = vpop.f32.mrb[0].mxu0
      %682 = vmatprep.mubr.bf16.mxu0 0
      %683 = vmatmul.mubr.bf16.gmra.mrb[0].mxu0 %v526
      %v684 = vpop.f32.mrb[0].mxu0
      %v685 = vadd.f32 0.0, %v684
      %v686 = vpop.f32.mrb[0].mxu0
      %v687 = vpop.f32.mrb[0].mxu0
      %v688 = vadd.f32 0.0, %v687
      %v689 = vpop.f32.mrb[0].mxu0
      %690 = vmatprep.mubr.bf16.mxu0 0
      %691 = vmatmul.mubr.bf16.gmra.mrb[0].mxu0 %v529
      %v692 = vpop.f32.mrb[0].mxu0
      %v693 = vadd.f32 0.0, %v692
      %v694 = vpop.f32.mrb[0].mxu0
      %v695 = vpop.f32.mrb[0].mxu0
      %v696 = vadd.f32 0.0, %v695
      %v697 = vpop.f32.mrb[0].mxu0
      %698 = vmatprep.mubr.bf16.mxu0 0
      %699 = vmatmul.mubr.bf16.gmra.mrb[0].mxu0 %v532
      %v700 = vpop.f32.mrb[0].mxu0
      %v701 = vadd.f32 0.0, %v700
      %v702 = vpop.f32.mrb[0].mxu0
      %v703 = vpop.f32.mrb[0].mxu0
      %v704 = vadd.f32 0.0, %v703
      %v705 = vpop.f32.mrb[0].mxu0
      %706 = vmatprep.mubr.bf16.mxu0 0
      %707 = vmatmul.mubr.bf16.gmra.mrb[0].mxu0 %v535
      %v708 = vpop.f32.mrb[0].mxu0
      %v709 = vadd.f32 0.0, %v708
      %v710 = vpop.f32.mrb[0].mxu0
      %v711 = vpop.f32.mrb[0].mxu0
      %v712 = vadd.f32 0.0, %v711
      %v713 = vpop.f32.mrb[0].mxu0
      %714 = vmatprep.mubr.bf16.mxu0 0
      %715 = vmatmul.mubr.bf16.gmra.mrb[0].mxu0 %v538
      %v716 = vpop.f32.mrb[0].mxu0
      %v717 = vadd.f32 0.0, %v716
      %v718 = vpop.f32.mrb[0].mxu0
      %v719 = vpop.f32.mrb[0].mxu0
      %v720 = vadd.f32 0.0, %v719
      %v721 = vpop.f32.mrb[0].mxu0
      %722 = vmatprep.mubr.bf16.mxu0 0
      %723 = vmatmul.mubr.bf16.gmra.mrb[0].mxu0 %v541
      %v724 = vpop.f32.mrb[0].mxu0
      %v725 = vadd.f32 0.0, %v724
      %v726 = vpop.f32.mrb[0].mxu0
      %v727 = vpop.f32.mrb[0].mxu0
      %v728 = vadd.f32 0.0, %v727
      %v729 = vpop.f32.mrb[0].mxu0
      %730 = vmatprep.mubr.bf16.mxu0 0
      %731 = vmatmul.mubr.bf16.gmra.mrb[0].mxu0 %v544
      %v732 = vpop.f32.mrb[0].mxu0
      %v733 = vadd.f32 0.0, %v732
      %v734 = vpop.f32.mrb[0].mxu0
      %v735 = vpop.f32.mrb[0].mxu0
      %v736 = vadd.f32 0.0, %v735
      %v737 = vpop.f32.mrb[0].mxu0
      %738 = vmatprep.mubr.bf16.mxu0 0
      %739 = vmatmul.mubr.bf16.gmra.mrb[0].mxu0 %v547
      %v740 = vpop.f32.mrb[0].mxu0
      %v741 = vadd.f32 0.0, %v740
      %v742 = vpop.f32.mrb[0].mxu0
      %v743 = vpop.f32.mrb[0].mxu0
      %v744 = vadd.f32 0.0, %v743
      %v745 = vpop.f32.mrb[0].mxu0
      %746 = vmatprep.mubr.bf16.mxu0 0
      %747 = vmatmul.mubr.bf16.gmra.mrb[0].mxu0 %v550
      %v748 = vpop.f32.mrb[0].mxu0
      %v749 = vadd.f32 0.0, %v748
      %v750 = vpop.f32.mrb[0].mxu0
      %v751 = vpop.f32.mrb[0].mxu0
      %v752 = vadd.f32 0.0, %v751
      %v753 = vpop.f32.mrb[0].mxu0
      %754 = vmatprep.mubr.bf16.mxu0 0
      %755 = vmatmul.mubr.bf16.gmra.mrb[0].mxu0 %v553
      %v756 = vpop.f32.mrb[0].mxu0
      %v757 = vadd.f32 0.0, %v756
      %v758 = vpop.f32.mrb[0].mxu0
      %v759 = vpop.f32.mrb[0].mxu0
      %v760 = vadd.f32 0.0, %v759
      %v761 = vpop.f32.mrb[0].mxu0
      %762 = vmatprep.mubr.bf16.mxu0 0
      %763 = vmatmul.mubr.bf16.gmra.mrb[0].mxu0 %v556
      %v764 = vpop.f32.mrb[0].mxu0
      %v765 = vadd.f32 0.0, %v764
      %v766 = vpop.f32.mrb[0].mxu0
      %v767 = vpop.f32.mrb[0].mxu0
      %v768 = vadd.f32 0.0, %v767
      %v769 = vpop.f32.mrb[0].mxu0
      %770 = vmatprep.mubr.bf16.mxu0 0
      %771 = vmatmul.mubr.bf16.gmra.mrb[0].mxu0 %v559
      %v772 = vpop.f32.mrb[0].mxu0
      %v773 = vadd.f32 0.0, %v772
      %v774 = vpop.f32.mrb[0].mxu0
      %v775 = vpop.f32.mrb[0].mxu0
      %v776 = vadd.f32 0.0, %v775
      %v777 = vpop.f32.mrb[0].mxu0
      %778 = vmatprep.mubr.bf16.mxu0 0
      %779 = vmatmul.mubr.bf16.gmra.mrb[0].mxu0 %v562
      %v780 = vpop.f32.mrb[0].mxu0
      %v781 = vadd.f32 0.0, %v780
      %v782 = vpop.f32.mrb[0].mxu0
      %v783 = vpop.f32.mrb[0].mxu0
      %v784 = vadd.f32 0.0, %v783
      %v785 = vpop.f32.mrb[0].mxu0
      %786 = vmatprep.mubr.bf16.mxu0 0
      %787 = vmatmul.mubr.bf16.gmra.mrb[0].mxu0 %v565
      %v788 = vpop.f32.mrb[0].mxu0
      %v789 = vadd.f32 0.0, %v788
      %v790 = vpop.f32.mrb[0].mxu0
      %v791 = vpop.f32.mrb[0].mxu0
      %v792 = vadd.f32 0.0, %v791
      %v793 = vpop.f32.mrb[0].mxu0
      %794 = vmatprep.mubr.bf16.mxu0 0
      %795 = vmatmul.mubr.bf16.gmra.mrb[0].mxu0 %v568
      %v796 = vpop.f32.mrb[0].mxu0
      %v797 = vadd.f32 0.0, %v796
      %v798 = vpop.f32.mrb[0].mxu0
      %v799 = vpop.f32.mrb[0].mxu0
      %v800 = vadd.f32 0.0, %v799
      %v801 = vpop.f32.mrb[0].mxu0
      %802 = vmatprep.mubr.bf16.mxu0 0
      %803 = vmatmul.mubr.bf16.gmra.mrb[0].mxu0 %v571
      %v804 = vpop.f32.mrb[0].mxu0
      %v805 = vadd.f32 0.0, %v804
      %v806 = vpop.f32.mrb[0].mxu0
      %v807 = vpop.f32.mrb[0].mxu0
      %v808 = vadd.f32 0.0, %v807
      %v809 = vpop.f32.mrb[0].mxu0
      %810 = vmatprep.mubr.bf16.mxu0 0
      %811 = vmatmul.mubr.bf16.gmra.mrb[0].mxu0 %v574
      %v812 = vpop.f32.mrb[0].mxu0
      %v813 = vadd.f32 0.0, %v812
      %v814 = vpop.f32.mrb[0].mxu0
      %v815 = vpop.f32.mrb[0].mxu0
      %v816 = vadd.f32 0.0, %v815
      %v817 = vpop.f32.mrb[0].mxu0
      %818 = vmatprep.mubr.bf16.mxu0 0
      %819 = vmatmul.mubr.bf16.gmra.mrb[0].mxu0 %v577
      %v820 = vpop.f32.mrb[0].mxu0
      %v821 = vadd.f32 0.0, %v820
      %v822 = vpop.f32.mrb[0].mxu0
      %v823 = vpop.f32.mrb[0].mxu0
      %v824 = vadd.f32 0.0, %v823
      %v825 = vpop.f32.mrb[0].mxu0
      %826 = vmatprep.mubr.bf16.mxu0 0
      %827 = vmatmul.mubr.bf16.gmra.mrb[0].mxu0 %v580
      %v828 = vpop.f32.mrb[0].mxu0
      %v829 = vadd.f32 0.0, %v828
      %v830 = vpop.f32.mrb[0].mxu0
      %v831 = vpop.f32.mrb[0].mxu0
      %v832 = vadd.f32 0.0, %v831
      %v833 = vpop.f32.mrb[0].mxu0
      %834 = vmatprep.mubr.bf16.mxu0 0
      %835 = vmatmul.mubr.bf16.gmra.mrb[0].mxu0 %v583
      %v836 = vpop.f32.mrb[0].mxu0
      %v837 = vadd.f32 0.0, %v836
      %v838 = vpop.f32.mrb[0].mxu0
      %v839 = vpop.f32.mrb[0].mxu0
      %v840 = vadd.f32 0.0, %v839
      %v841 = vpop.f32.mrb[0].mxu0
      %842 = vmatprep.mubr.bf16.mxu0 0
      %843 = vmatmul.mubr.bf16.gmra.mrb[0].mxu0 %v586
      %v844 = vpop.f32.mrb[0].mxu0
      %v845 = vadd.f32 0.0, %v844
      %v846 = vpop.f32.mrb[0].mxu0
      %v847 = vpop.f32.mrb[0].mxu0
      %v848 = vadd.f32 0.0, %v847
      %v849 = vpop.f32.mrb[0].mxu0
      %850 = vmatprep.mubr.bf16.mxu0 0
      %851 = vmatmul.mubr.bf16.gmra.mrb[0].mxu0 %v589
      %v852 = vpop.f32.mrb[0].mxu0
      %v853 = vadd.f32 0.0, %v852
      %v854 = vpop.f32.mrb[0].mxu0
      %v855 = vpop.f32.mrb[0].mxu0
      %v856 = vadd.f32 0.0, %v855
      %v857 = vpop.f32.mrb[0].mxu0
      %858 = vmatprep.mubr.bf16.mxu0 0
      %859 = vmatmul.mubr.bf16.gmra.mrb[0].mxu0 %v592
      %v860 = vpop.f32.mrb[0].mxu0
      %v861 = vadd.f32 0.0, %v860
      %v862 = vpop.f32.mrb[0].mxu0
      %v863 = vpop.f32.mrb[0].mxu0
      %v864 = vadd.f32 0.0, %v863
      %v865 = vpop.f32.mrb[0].mxu0
      %866 = vmatprep.mubr.bf16.mxu0 0
      %867 = vmatmul.mubr.bf16.gmra.mrb[0].mxu0 %v595
      %v868 = vpop.f32.mrb[0].mxu0
      %v869 = vadd.f32 0.0, %v868
      %v870 = vpop.f32.mrb[0].mxu0
      %v871 = vpop.f32.mrb[0].mxu0
      %v872 = vadd.f32 0.0, %v871
      %v873 = vpop.f32.mrb[0].mxu0
      %874 = vmatprep.mubr.bf16.mxu0 0
      %875 = vmatmul.mubr.bf16.gmra.mrb[0].mxu0 %v598
      %v876 = vpop.f32.mrb[0].mxu0
      %v877 = vadd.f32 0.0, %v876
      %v878 = vpop.f32.mrb[0].mxu0
      %v879 = vpop.f32.mrb[0].mxu0
      %v880 = vadd.f32 0.0, %v879
      %v881 = vpop.f32.mrb[0].mxu0
      %882 = vmatprep.mubr.bf16.mxu0 0
      %883 = vmatmul.mubr.bf16.gmra.mrb[0].mxu0 %v601
      %v884 = vpop.f32.mrb[0].mxu0
      %v885 = vadd.f32 0.0, %v884
      %v886 = vpop.f32.mrb[0].mxu0
      %v887 = vpop.f32.mrb[0].mxu0
      %v888 = vadd.f32 0.0, %v887
      %v889 = vpop.f32.mrb[0].mxu0
      %890 = vmatprep.mubr.bf16.mxu0 0
      %891 = vmatmul.mubr.bf16.gmra.mrb[0].mxu0 %v604
      %v892 = vpop.f32.mrb[0].mxu0
      %v893 = vadd.f32 0.0, %v892
      %v894 = vpop.f32.mrb[0].mxu0
      %v895 = vpop.f32.mrb[0].mxu0
      %v896 = vadd.f32 0.0, %v895
      %v897 = vpop.f32.mrb[0].mxu0
      %898 = vdwg.mxu0
      %v899 = vmul.f32 %v645, 0.9995004
      %v900 = vmul.f32 %v648, 0.9995004
      %v901 = vmul.f32 %v653, 0.9995004
      %v902 = vmul.f32 %v656, 0.9995004
      %v903 = vmul.f32 %v661, 0.9995004
      %v904 = vmul.f32 %v664, 0.9995004
      %v905 = vmul.f32 %v669, 0.9995004
      %v906 = vmul.f32 %v672, 0.9995004
      %v907 = vmul.f32 %v677, 0.9995004
      %v908 = vmul.f32 %v680, 0.9995004
      %v909 = vmul.f32 %v685, 0.9995004
      %v910 = vmul.f32 %v688, 0.9995004
      %v911 = vmul.f32 %v693, 0.9995004
      %v912 = vmul.f32 %v696, 0.9995004
      %v913 = vmul.f32 %v701, 0.9995004
      %v914 = vmul.f32 %v704, 0.9995004
      %v915 = vmul.f32 %v709, 0.9995004
      %v916 = vmul.f32 %v712, 0.9995004
      %v917 = vmul.f32 %v717, 0.9995004
      %v918 = vmul.f32 %v720, 0.9995004
      %v919 = vmul.f32 %v725, 0.9995004
      %v920 = vmul.f32 %v728, 0.9995004
      %v921 = vmul.f32 %v733, 0.9995004
      %v922 = vmul.f32 %v736, 0.9995004
      %v923 = vmul.f32 %v741, 0.9995004
      %v924 = vmul.f32 %v744, 0.9995004
      %v925 = vmul.f32 %v749, 0.9995004
      %v926 = vmul.f32 %v752, 0.9995004
      %v927 = vmul.f32 %v757, 0.9995004
      %v928 = vmul.f32 %v760, 0.9995004
      %v929 = vmul.f32 %v765, 0.9995004
      %v930 = vmul.f32 %v768, 0.9995004
      %v931 = vmul.f32 %v773, 0.9995004
      %v932 = vmul.f32 %v776, 0.9995004
      %v933 = vmul.f32 %v781, 0.9995004
      %v934 = vmul.f32 %v784, 0.9995004
      %v935 = vmul.f32 %v789, 0.9995004
      %v936 = vmul.f32 %v792, 0.9995004
      %v937 = vmul.f32 %v797, 0.9995004
      %v938 = vmul.f32 %v800, 0.9995004
      %v939 = vmul.f32 %v805, 0.9995004
      %v940 = vmul.f32 %v808, 0.9995004
      %v941 = vmul.f32 %v813, 0.9995004
      %v942 = vmul.f32 %v816, 0.9995004
      %v943 = vmul.f32 %v821, 0.9995004
      %v944 = vmul.f32 %v824, 0.9995004
      %v945 = vmul.f32 %v829, 0.9995004
      %v946 = vmul.f32 %v832, 0.9995004
      %v947 = vmul.f32 %v837, 0.9995004
      %v948 = vmul.f32 %v840, 0.9995004
      %v949 = vmul.f32 %v845, 0.9995004
      %v950 = vmul.f32 %v848, 0.9995004
      %v951 = vmul.f32 %v853, 0.9995004
      %v952 = vmul.f32 %v856, 0.9995004
      %v953 = vmul.f32 %v861, 0.9995004
      %v954 = vmul.f32 %v864, 0.9995004
      %v955 = vmul.f32 %v869, 0.9995004
      %v956 = vmul.f32 %v872, 0.9995004
      %v957 = vmul.f32 %v877, 0.9995004
      %v958 = vmul.f32 %v880, 0.9995004
      %v959 = vmul.f32 %v885, 0.9995004
      %v960 = vmul.f32 %v888, 0.9995004
      %v961 = vmul.f32 %v893, 0.9995004
      %v962 = vmul.f32 %v896, 0.9995004
      %v963 = vadd.f32 %v899, 3.0
      %v964 = vadd.f32 %v900, 3.0
      %v965 = vadd.f32 %v901, 3.0
      %v966 = vadd.f32 %v902, 3.0
      %v967 = vadd.f32 %v903, 3.0
      %v968 = vadd.f32 %v904, 3.0
      %v969 = vadd.f32 %v905, 3.0
      %v970 = vadd.f32 %v906, 3.0
      %v971 = vadd.f32 %v907, 3.0
      %v972 = vadd.f32 %v908, 3.0
      %v973 = vadd.f32 %v909, 3.0
      %v974 = vadd.f32 %v910, 3.0
      %v975 = vadd.f32 %v911, 3.0
      %v976 = vadd.f32 %v912, 3.0
      %v977 = vadd.f32 %v913, 3.0
      %v978 = vadd.f32 %v914, 3.0
      %v979 = vadd.f32 %v915, 3.0
      %v980 = vadd.f32 %v916, 3.0
      %v981 = vadd.f32 %v917, 3.0
      %v982 = vadd.f32 %v918, 3.0
      %v983 = vadd.f32 %v919, 3.0
      %v984 = vadd.f32 %v920, 3.0
      %v985 = vadd.f32 %v921, 3.0
      %v986 = vadd.f32 %v922, 3.0
      %v987 = vadd.f32 %v923, 3.0
      %v988 = vadd.f32 %v924, 3.0
      %v989 = vadd.f32 %v925, 3.0
      %v990 = vadd.f32 %v926, 3.0
      %v991 = vadd.f32 %v927, 3.0
      %v992 = vadd.f32 %v928, 3.0
      %v993 = vadd.f32 %v929, 3.0
      %v994 = vadd.f32 %v930, 3.0
      %v995 = vadd.f32 %v931, 3.0
      %v996 = vadd.f32 %v932, 3.0
      %v997 = vadd.f32 %v933, 3.0
      %v998 = vadd.f32 %v934, 3.0
      %v999 = vadd.f32 %v935, 3.0
      %v1000 = vadd.f32 %v936, 3.0
      %v1001 = vadd.f32 %v937, 3.0
      %v1002 = vadd.f32 %v938, 3.0
      %v1003 = vadd.f32 %v939, 3.0
      %v1004 = vadd.f32 %v940, 3.0
      %v1005 = vadd.f32 %v941, 3.0
      %v1006 = vadd.f32 %v942, 3.0
      %v1007 = vadd.f32 %v943, 3.0
      %v1008 = vadd.f32 %v944, 3.0
      %v1009 = vadd.f32 %v945, 3.0
      %v1010 = vadd.f32 %v946, 3.0
      %v1011 = vadd.f32 %v947, 3.0
      %v1012 = vadd.f32 %v948, 3.0
      %v1013 = vadd.f32 %v949, 3.0
      %v1014 = vadd.f32 %v950, 3.0
      %v1015 = vadd.f32 %v951, 3.0
      %v1016 = vadd.f32 %v952, 3.0
      %v1017 = vadd.f32 %v953, 3.0
      %v1018 = vadd.f32 %v954, 3.0
      %v1019 = vadd.f32 %v955, 3.0
      %v1020 = vadd.f32 %v956, 3.0
      %v1021 = vadd.f32 %v957, 3.0
      %v1022 = vadd.f32 %v958, 3.0
      %v1023 = vadd.f32 %v959, 3.0
      %v1024 = vadd.f32 %v960, 3.0
      %v1025 = vadd.f32 %v961, 3.0
      %v1026 = vadd.f32 %v962, 3.0
      %v1027 = vmax.f32 %v963, 0.0
      %v1028 = vmax.f32 %v964, 0.0
      %v1029 = vmax.f32 %v965, 0.0
      %v1030 = vmax.f32 %v966, 0.0
      %v1031 = vmax.f32 %v967, 0.0
      %v1032 = vmax.f32 %v968, 0.0
      %v1033 = vmax.f32 %v969, 0.0
      %v1034 = vmax.f32 %v970, 0.0
      %v1035 = vmax.f32 %v971, 0.0
      %v1036 = vmax.f32 %v972, 0.0
      %v1037 = vmax.f32 %v973, 0.0
      %v1038 = vmax.f32 %v974, 0.0
      %v1039 = vmax.f32 %v975, 0.0
      %v1040 = vmax.f32 %v976, 0.0
      %v1041 = vmax.f32 %v977, 0.0
      %v1042 = vmax.f32 %v978, 0.0
      %v1043 = vmax.f32 %v979, 0.0
      %v1044 = vmax.f32 %v980, 0.0
      %v1045 = vmax.f32 %v981, 0.0
      %v1046 = vmax.f32 %v982, 0.0
      %v1047 = vmax.f32 %v983, 0.0
      %v1048 = vmax.f32 %v984, 0.0
      %v1049 = vmax.f32 %v985, 0.0
      %v1050 = vmax.f32 %v986, 0.0
      %v1051 = vmax.f32 %v987, 0.0
      %v1052 = vmax.f32 %v988, 0.0
      %v1053 = vmax.f32 %v989, 0.0
      %v1054 = vmax.f32 %v990, 0.0
      %v1055 = vmax.f32 %v991, 0.0
      %v1056 = vmax.f32 %v992, 0.0
      %v1057 = vmax.f32 %v993, 0.0
      %v1058 = vmax.f32 %v994, 0.0
      %v1059 = vmax.f32 %v995, 0.0
      %v1060 = vmax.f32 %v996, 0.0
      %v1061 = vmax.f32 %v997, 0.0
      %v1062 = vmax.f32 %v998, 0.0
      %v1063 = vmax.f32 %v999, 0.0
      %v1064 = vmax.f32 %v1000, 0.0
      %v1065 = vmax.f32 %v1001, 0.0
      %v1066 = vmax.f32 %v1002, 0.0
      %v1067 = vmax.f32 %v1003, 0.0
      %v1068 = vmax.f32 %v1004, 0.0
      %v1069 = vmax.f32 %v1005, 0.0
      %v1070 = vmax.f32 %v1006, 0.0
      %v1071 = vmax.f32 %v1007, 0.0
      %v1072 = vmax.f32 %v1008, 0.0
      %v1073 = vmax.f32 %v1009, 0.0
      %v1074 = vmax.f32 %v1010, 0.0
      %v1075 = vmax.f32 %v1011, 0.0
      %v1076 = vmax.f32 %v1012, 0.0
      %v1077 = vmax.f32 %v1013, 0.0
      %v1078 = vmax.f32 %v1014, 0.0
      %v1079 = vmax.f32 %v1015, 0.0
      %v1080 = vmax.f32 %v1016, 0.0
      %v1081 = vmax.f32 %v1017, 0.0
      %v1082 = vmax.f32 %v1018, 0.0
      %v1083 = vmax.f32 %v1019, 0.0
      %v1084 = vmax.f32 %v1020, 0.0
      %v1085 = vmax.f32 %v1021, 0.0
      %v1086 = vmax.f32 %v1022, 0.0
      %v1087 = vmax.f32 %v1023, 0.0
      %v1088 = vmax.f32 %v1024, 0.0
      %v1089 = vmax.f32 %v1025, 0.0
      %v1090 = vmax.f32 %v1026, 0.0
      %v1091 = vmin.f32 %v1027, 6.0
      %v1092 = vmin.f32 %v1028, 6.0
      %v1093 = vmin.f32 %v1029, 6.0
      %v1094 = vmin.f32 %v1030, 6.0
      %v1095 = vmin.f32 %v1031, 6.0
      %v1096 = vmin.f32 %v1032, 6.0
      %v1097 = vmin.f32 %v1033, 6.0
      %v1098 = vmin.f32 %v1034, 6.0
      %v1099 = vmin.f32 %v1035, 6.0
      %v1100 = vmin.f32 %v1036, 6.0
      %v1101 = vmin.f32 %v1037, 6.0
      %v1102 = vmin.f32 %v1038, 6.0
      %v1103 = vmin.f32 %v1039, 6.0
      %v1104 = vmin.f32 %v1040, 6.0
      %v1105 = vmin.f32 %v1041, 6.0
      %v1106 = vmin.f32 %v1042, 6.0
      %v1107 = vmin.f32 %v1043, 6.0
      %v1108 = vmin.f32 %v1044, 6.0
      %v1109 = vmin.f32 %v1045, 6.0
      %v1110 = vmin.f32 %v1046, 6.0
      %v1111 = vmin.f32 %v1047, 6.0
      %v1112 = vmin.f32 %v1048, 6.0
      %v1113 = vmin.f32 %v1049, 6.0
      %v1114 = vmin.f32 %v1050, 6.0
      %v1115 = vmin.f32 %v1051, 6.0
      %v1116 = vmin.f32 %v1052, 6.0
      %v1117 = vmin.f32 %v1053, 6.0
      %v1118 = vmin.f32 %v1054, 6.0
      %v1119 = vmin.f32 %v1055, 6.0
      %v1120 = vmin.f32 %v1056, 6.0
      %v1121 = vmin.f32 %v1057, 6.0
      %v1122 = vmin.f32 %v1058, 6.0
      %v1123 = vmin.f32 %v1059, 6.0
      %v1124 = vmin.f32 %v1060, 6.0
      %v1125 = vmin.f32 %v1061, 6.0
      %v1126 = vmin.f32 %v1062, 6.0
      %v1127 = vmin.f32 %v1063, 6.0
      %v1128 = vmin.f32 %v1064, 6.0
      %v1129 = vmin.f32 %v1065, 6.0
      %v1130 = vmin.f32 %v1066, 6.0
      %v1131 = vmin.f32 %v1067, 6.0
      %v1132 = vmin.f32 %v1068, 6.0
      %v1133 = vmin.f32 %v1069, 6.0
      %v1134 = vmin.f32 %v1070, 6.0
      %v1135 = vmin.f32 %v1071, 6.0
      %v1136 = vmin.f32 %v1072, 6.0
      %v1137 = vmin.f32 %v1073, 6.0
      %v1138 = vmin.f32 %v1074, 6.0
      %v1139 = vmin.f32 %v1075, 6.0
      %v1140 = vmin.f32 %v1076, 6.0
      %v1141 = vmin.f32 %v1077, 6.0
      %v1142 = vmin.f32 %v1078, 6.0
      %v1143 = vmin.f32 %v1079, 6.0
      %v1144 = vmin.f32 %v1080, 6.0
      %v1145 = vmin.f32 %v1081, 6.0
      %v1146 = vmin.f32 %v1082, 6.0
      %v1147 = vmin.f32 %v1083, 6.0
      %v1148 = vmin.f32 %v1084, 6.0
      %v1149 = vmin.f32 %v1085, 6.0
      %v1150 = vmin.f32 %v1086, 6.0
      %v1151 = vmin.f32 %v1087, 6.0
      %v1152 = vmin.f32 %v1088, 6.0
      %v1153 = vmin.f32 %v1089, 6.0
      %v1154 = vmin.f32 %v1090, 6.0
      %v1155 = vmul.f32 %v899, %v1091
      %v1156 = vmul.f32 %v900, %v1092
      %v1157 = vmul.f32 %v901, %v1093
      %v1158 = vmul.f32 %v902, %v1094
      %v1159 = vmul.f32 %v903, %v1095
      %v1160 = vmul.f32 %v904, %v1096
      %v1161 = vmul.f32 %v905, %v1097
      %v1162 = vmul.f32 %v906, %v1098
      %v1163 = vmul.f32 %v907, %v1099
      %v1164 = vmul.f32 %v908, %v1100
      %v1165 = vmul.f32 %v909, %v1101
      %v1166 = vmul.f32 %v910, %v1102
      %v1167 = vmul.f32 %v911, %v1103
      %v1168 = vmul.f32 %v912, %v1104
      %v1169 = vmul.f32 %v913, %v1105
      %v1170 = vmul.f32 %v914, %v1106
      %v1171 = vmul.f32 %v915, %v1107
      %v1172 = vmul.f32 %v916, %v1108
      %v1173 = vmul.f32 %v917, %v1109
      %v1174 = vmul.f32 %v918, %v1110
      %v1175 = vmul.f32 %v919, %v1111
      %v1176 = vmul.f32 %v920, %v1112
      %v1177 = vmul.f32 %v921, %v1113
      %v1178 = vmul.f32 %v922, %v1114
      %v1179 = vmul.f32 %v923, %v1115
      %v1180 = vmul.f32 %v924, %v1116
      %v1181 = vmul.f32 %v925, %v1117
      %v1182 = vmul.f32 %v926, %v1118
      %v1183 = vmul.f32 %v927, %v1119
      %v1184 = vmul.f32 %v928, %v1120
      %v1185 = vmul.f32 %v929, %v1121
      %v1186 = vmul.f32 %v930, %v1122
      %v1187 = vmul.f32 %v931, %v1123
      %v1188 = vmul.f32 %v932, %v1124
      %v1189 = vmul.f32 %v933, %v1125
      %v1190 = vmul.f32 %v934, %v1126
      %v1191 = vmul.f32 %v935, %v1127
      %v1192 = vmul.f32 %v936, %v1128
      %v1193 = vmul.f32 %v937, %v1129
      %v1194 = vmul.f32 %v938, %v1130
      %v1195 = vmul.f32 %v939, %v1131
      %v1196 = vmul.f32 %v940, %v1132
      %v1197 = vmul.f32 %v941, %v1133
      %v1198 = vmul.f32 %v942, %v1134
      %v1199 = vmul.f32 %v943, %v1135
      %v1200 = vmul.f32 %v944, %v1136
      %v1201 = vmul.f32 %v945, %v1137
      %v1202 = vmul.f32 %v946, %v1138
      %v1203 = vmul.f32 %v947, %v1139
      %v1204 = vmul.f32 %v948, %v1140
      %v1205 = vmul.f32 %v949, %v1141
      %v1206 = vmul.f32 %v950, %v1142
      %v1207 = vmul.f32 %v951, %v1143
      %v1208 = vmul.f32 %v952, %v1144
      %v1209 = vmul.f32 %v953, %v1145
      %v1210 = vmul.f32 %v954, %v1146
      %v1211 = vmul.f32 %v955, %v1147
      %v1212 = vmul.f32 %v956, %v1148
      %v1213 = vmul.f32 %v957, %v1149
      %v1214 = vmul.f32 %v958, %v1150
      %v1215 = vmul.f32 %v959, %v1151
      %v1216 = vmul.f32 %v960, %v1152
      %v1217 = vmul.f32 %v961, %v1153
      %v1218 = vmul.f32 %v962, %v1154
      %v1219 = vmul.f32 %v1155, 0.16666667
      %v1220 = vmul.f32 %v1156, 0.16666667
      %v1221 = vmul.f32 %v1157, 0.16666667
      %v1222 = vmul.f32 %v1158, 0.16666667
      %v1223 = vmul.f32 %v1159, 0.16666667
      %v1224 = vmul.f32 %v1160, 0.16666667
      %v1225 = vmul.f32 %v1161, 0.16666667
      %v1226 = vmul.f32 %v1162, 0.16666667
      %v1227 = vmul.f32 %v1163, 0.16666667
      %v1228 = vmul.f32 %v1164, 0.16666667
      %v1229 = vmul.f32 %v1165, 0.16666667
      %v1230 = vmul.f32 %v1166, 0.16666667
      %v1231 = vmul.f32 %v1167, 0.16666667
      %v1232 = vmul.f32 %v1168, 0.16666667
      %v1233 = vmul.f32 %v1169, 0.16666667
      %v1234 = vmul.f32 %v1170, 0.16666667
      %v1235 = vmul.f32 %v1171, 0.16666667
      %v1236 = vmul.f32 %v1172, 0.16666667
      %v1237 = vmul.f32 %v1173, 0.16666667
      %v1238 = vmul.f32 %v1174, 0.16666667
      %v1239 = vmul.f32 %v1175, 0.16666667
      %v1240 = vmul.f32 %v1176, 0.16666667
      %v1241 = vmul.f32 %v1177, 0.16666667
      %v1242 = vmul.f32 %v1178, 0.16666667
      %v1243 = vmul.f32 %v1179, 0.16666667
      %v1244 = vmul.f32 %v1180, 0.16666667
      %v1245 = vmul.f32 %v1181, 0.16666667
      %v1246 = vmul.f32 %v1182, 0.16666667
      %v1247 = vmul.f32 %v1183, 0.16666667
      %v1248 = vmul.f32 %v1184, 0.16666667
      %v1249 = vmul.f32 %v1185, 0.16666667
      %v1250 = vmul.f32 %v1186, 0.16666667
      %v1251 = vmul.f32 %v1187, 0.16666667
      %v1252 = vmul.f32 %v1188, 0.16666667
      %v1253 = vmul.f32 %v1189, 0.16666667
      %v1254 = vmul.f32 %v1190, 0.16666667
      %v1255 = vmul.f32 %v1191, 0.16666667
      %v1256 = vmul.f32 %v1192, 0.16666667
      %v1257 = vmul.f32 %v1193, 0.16666667
      %v1258 = vmul.f32 %v1194, 0.16666667
      %v1259 = vmul.f32 %v1195, 0.16666667
      %v1260 = vmul.f32 %v1196, 0.16666667
      %v1261 = vmul.f32 %v1197, 0.16666667
      %v1262 = vmul.f32 %v1198, 0.16666667
      %v1263 = vmul.f32 %v1199, 0.16666667
      %v1264 = vmul.f32 %v1200, 0.16666667
      %v1265 = vmul.f32 %v1201, 0.16666667
      %v1266 = vmul.f32 %v1202, 0.16666667
      %v1267 = vmul.f32 %v1203, 0.16666667
      %v1268 = vmul.f32 %v1204, 0.16666667
      %v1269 = vmul.f32 %v1205, 0.16666667
      %v1270 = vmul.f32 %v1206, 0.16666667
      %v1271 = vmul.f32 %v1207, 0.16666667
      %v1272 = vmul.f32 %v1208, 0.16666667
      %v1273 = vmul.f32 %v1209, 0.16666667
      %v1274 = vmul.f32 %v1210, 0.16666667
      %v1275 = vmul.f32 %v1211, 0.16666667
      %v1276 = vmul.f32 %v1212, 0.16666667
      %v1277 = vmul.f32 %v1213, 0.16666667
      %v1278 = vmul.f32 %v1214, 0.16666667
      %v1279 = vmul.f32 %v1215, 0.16666667
      %v1280 = vmul.f32 %v1216, 0.16666667
      %v1281 = vmul.f32 %v1217, 0.16666667
      %v1282 = vmul.f32 %v1218, 0.16666667
      %v1283 = vpack.c.bf16 %v1220, %v1219
      %v1284 = vpack.c.bf16 %v1222, %v1221
      %v1285 = vpack.c.bf16 %v1224, %v1223
      %v1286 = vpack.c.bf16 %v1226, %v1225
      %v1287 = vpack.c.bf16 %v1228, %v1227
      %v1288 = vpack.c.bf16 %v1230, %v1229
      %v1289 = vpack.c.bf16 %v1232, %v1231
      %v1290 = vpack.c.bf16 %v1234, %v1233
      %v1291 = vpack.c.bf16 %v1236, %v1235
      %v1292 = vpack.c.bf16 %v1238, %v1237
      %v1293 = vpack.c.bf16 %v1240, %v1239
      %v1294 = vpack.c.bf16 %v1242, %v1241
      %v1295 = vpack.c.bf16 %v1244, %v1243
      %v1296 = vpack.c.bf16 %v1246, %v1245
      %v1297 = vpack.c.bf16 %v1248, %v1247
      %v1298 = vpack.c.bf16 %v1250, %v1249
      %v1299 = vpack.c.bf16 %v1252, %v1251
      %v1300 = vpack.c.bf16 %v1254, %v1253
      %v1301 = vpack.c.bf16 %v1256, %v1255
      %v1302 = vpack.c.bf16 %v1258, %v1257
      %v1303 = vpack.c.bf16 %v1260, %v1259
      %v1304 = vpack.c.bf16 %v1262, %v1261
      %v1305 = vpack.c.bf16 %v1264, %v1263
      %v1306 = vpack.c.bf16 %v1266, %v1265
      %v1307 = vpack.c.bf16 %v1268, %v1267
      %v1308 = vpack.c.bf16 %v1270, %v1269
      %v1309 = vpack.c.bf16 %v1272, %v1271
      %v1310 = vpack.c.bf16 %v1274, %v1273
      %v1311 = vpack.c.bf16 %v1276, %v1275
      %v1312 = vpack.c.bf16 %v1278, %v1277
      %v1313 = vpack.c.bf16 %v1280, %v1279
      %v1314 = vpack.c.bf16 %v1282, %v1281
      %v1347 = vunpack.c.l.b16 %v1283
      %v1348 = vunpack.c.h.b16 %v1283
      %v1349 = vunpack.c.l.b16 %v1284
      %v1350 = vunpack.c.h.b16 %v1284
      %v1351 = vunpack.c.l.b16 %v1285
      %v1352 = vunpack.c.h.b16 %v1285
      %v1353 = vunpack.c.l.b16 %v1286
      %v1354 = vunpack.c.h.b16 %v1286
      %v1355 = vunpack.c.l.b16 %v1287
      %v1356 = vunpack.c.h.b16 %v1287
      %v1357 = vunpack.c.l.b16 %v1288
      %v1358 = vunpack.c.h.b16 %v1288
      %v1359 = vunpack.c.l.b16 %v1289
      %v1360 = vunpack.c.h.b16 %v1289
      %v1361 = vunpack.c.l.b16 %v1290
      %v1362 = vunpack.c.h.b16 %v1290
      %v1363 = vunpack.c.l.b16 %v1291
      %v1364 = vunpack.c.h.b16 %v1291
      %v1365 = vunpack.c.l.b16 %v1292
      %v1366 = vunpack.c.h.b16 %v1292
      %v1367 = vunpack.c.l.b16 %v1293
      %v1368 = vunpack.c.h.b16 %v1293
      %v1369 = vunpack.c.l.b16 %v1294
      %v1370 = vunpack.c.h.b16 %v1294
      %v1371 = vunpack.c.l.b16 %v1295
      %v1372 = vunpack.c.h.b16 %v1295
      %v1373 = vunpack.c.l.b16 %v1296
      %v1374 = vunpack.c.h.b16 %v1296
      %v1375 = vunpack.c.l.b16 %v1297
      %v1376 = vunpack.c.h.b16 %v1297
      %v1377 = vunpack.c.l.b16 %v1298
      %v1378 = vunpack.c.h.b16 %v1298
      %v1379 = vunpack.c.l.b16 %v1299
      %v1380 = vunpack.c.h.b16 %v1299
      %v1381 = vunpack.c.l.b16 %v1300
      %v1382 = vunpack.c.h.b16 %v1300
      %v1383 = vunpack.c.l.b16 %v1301
      %v1384 = vunpack.c.h.b16 %v1301
      %v1385 = vunpack.c.l.b16 %v1302
      %v1386 = vunpack.c.h.b16 %v1302
      %v1387 = vunpack.c.l.b16 %v1303
      %v1388 = vunpack.c.h.b16 %v1303
      %v1389 = vunpack.c.l.b16 %v1304
      %v1390 = vunpack.c.h.b16 %v1304
      %v1391 = vunpack.c.l.b16 %v1305
      %v1392 = vunpack.c.h.b16 %v1305
      %v1393 = vunpack.c.l.b16 %v1306
      %v1394 = vunpack.c.h.b16 %v1306
      %v1395 = vunpack.c.l.b16 %v1307
      %v1396 = vunpack.c.h.b16 %v1307
      %v1397 = vunpack.c.l.b16 %v1308
      %v1398 = vunpack.c.h.b16 %v1308
      %v1399 = vunpack.c.l.b16 %v1309
      %v1400 = vunpack.c.h.b16 %v1309
      %v1401 = vunpack.c.l.b16 %v1310
      %v1402 = vunpack.c.h.b16 %v1310
      %v1403 = vunpack.c.l.b16 %v1311
      %v1404 = vunpack.c.h.b16 %v1311
      %v1405 = vunpack.c.l.b16 %v1312
      %v1406 = vunpack.c.h.b16 %v1312
      %v1407 = vunpack.c.l.b16 %v1313
      %v1408 = vunpack.c.h.b16 %v1313
      %v1409 = vunpack.c.l.b16 %v1314
      %v1410 = vunpack.c.h.b16 %v1314
      %v1411 = vpack.c.b16 %v1347, %v1347
      %v1412 = vpack.c.b16 %v1348, %v1348
      %v1413 = vpack.c.b16 %v1349, %v1349
      %v1414 = vpack.c.b16 %v1350, %v1350
      %v1415 = vpack.c.b16 %v1351, %v1351
      %v1416 = vpack.c.b16 %v1352, %v1352
      %v1417 = vpack.c.b16 %v1353, %v1353
      %v1418 = vpack.c.b16 %v1354, %v1354
      %v1419 = vpack.c.b16 %v1355, %v1355
      %v1420 = vpack.c.b16 %v1356, %v1356
      %v1421 = vpack.c.b16 %v1357, %v1357
      %v1422 = vpack.c.b16 %v1358, %v1358
      %v1423 = vpack.c.b16 %v1359, %v1359
      %v1424 = vpack.c.b16 %v1360, %v1360
      %v1425 = vpack.c.b16 %v1361, %v1361
      %v1426 = vpack.c.b16 %v1362, %v1362
      %v1427 = vpack.c.b16 %v1363, %v1363
      %v1428 = vpack.c.b16 %v1364, %v1364
      %v1429 = vpack.c.b16 %v1365, %v1365
      %v1430 = vpack.c.b16 %v1366, %v1366
      %v1431 = vpack.c.b16 %v1367, %v1367
      %v1432 = vpack.c.b16 %v1368, %v1368
      %v1433 = vpack.c.b16 %v1369, %v1369
      %v1434 = vpack.c.b16 %v1370, %v1370
      %v1435 = vpack.c.b16 %v1371, %v1371
      %v1436 = vpack.c.b16 %v1372, %v1372
      %v1437 = vpack.c.b16 %v1373, %v1373
      %v1438 = vpack.c.b16 %v1374, %v1374
      %v1439 = vpack.c.b16 %v1375, %v1375
      %v1440 = vpack.c.b16 %v1376, %v1376
      %v1441 = vpack.c.b16 %v1377, %v1377
      %v1442 = vpack.c.b16 %v1378, %v1378
      %v1443 = vpack.c.b16 %v1379, %v1379
      %v1444 = vpack.c.b16 %v1380, %v1380
      %v1445 = vpack.c.b16 %v1381, %v1381
      %v1446 = vpack.c.b16 %v1382, %v1382
      %v1447 = vpack.c.b16 %v1383, %v1383
      %v1448 = vpack.c.b16 %v1384, %v1384
      %v1449 = vpack.c.b16 %v1385, %v1385
      %v1450 = vpack.c.b16 %v1386, %v1386
      %v1451 = vpack.c.b16 %v1387, %v1387
      %v1452 = vpack.c.b16 %v1388, %v1388
      %v1453 = vpack.c.b16 %v1389, %v1389
      %v1454 = vpack.c.b16 %v1390, %v1390
      %v1455 = vpack.c.b16 %v1391, %v1391
      %v1456 = vpack.c.b16 %v1392, %v1392
      %v1457 = vpack.c.b16 %v1393, %v1393
      %v1458 = vpack.c.b16 %v1394, %v1394
      %v1459 = vpack.c.b16 %v1395, %v1395
      %v1460 = vpack.c.b16 %v1396, %v1396
      %v1461 = vpack.c.b16 %v1397, %v1397
      %v1462 = vpack.c.b16 %v1398, %v1398
      %v1463 = vpack.c.b16 %v1399, %v1399
      %v1464 = vpack.c.b16 %v1400, %v1400
      %v1465 = vpack.c.b16 %v1401, %v1401
      %v1466 = vpack.c.b16 %v1402, %v1402
      %v1467 = vpack.c.b16 %v1403, %v1403
      %v1468 = vpack.c.b16 %v1404, %v1404
      %v1469 = vpack.c.b16 %v1405, %v1405
      %v1470 = vpack.c.b16 %v1406, %v1406
      %v1471 = vpack.c.b16 %v1407, %v1407
      %v1472 = vpack.c.b16 %v1408, %v1408
      %v1473 = vpack.c.b16 %v1409, %v1409
      %v1474 = vpack.c.b16 %v1410, %v1410
      %vm1539 = vcmask 257024
      %1540 = vst.msk [vmem:[%s227] sm:$0xf] %vm1539, %v1411
      %1541 = vst.msk [vmem:[%s227 + $0x4] sm:$0xf] %vm1539, %v1412
      %1542 = vst.msk [vmem:[%s227 + $0x8] sm:$0xf] %vm1539, %v1413
      %1543 = vst.msk [vmem:[%s227 + $0xc] sm:$0xf] %vm1539, %v1414
      %1544 = vst.msk [vmem:[%s227 + $0x10] sm:$0xf] %vm1539, %v1415
      %1545 = vst.msk [vmem:[%s227 + $0x14] sm:$0xf] %vm1539, %v1416
      %1546 = vst.msk [vmem:[%s227 + $0x18] sm:$0xf] %vm1539, %v1417
      %1547 = vst.msk [vmem:[%s227 + $0x1c] sm:$0xf] %vm1539, %v1418
      %1548 = vst.msk [vmem:[%s227 + $0x20] sm:$0xf] %vm1539, %v1419
      %1549 = vst.msk [vmem:[%s227 + $0x24] sm:$0xf] %vm1539, %v1420
      %1550 = vst.msk [vmem:[%s227 + $0x28] sm:$0xf] %vm1539, %v1421
      %1551 = vst.msk [vmem:[%s227 + $0x2c] sm:$0xf] %vm1539, %v1422
      %1552 = vst.msk [vmem:[%s227 + $0x30] sm:$0xf] %vm1539, %v1423
      %1553 = vst.msk [vmem:[%s227 + $0x34] sm:$0xf] %vm1539, %v1424
      %1554 = vst.msk [vmem:[%s227 + $0x38] sm:$0xf] %vm1539, %v1425
      %1555 = vst.msk [vmem:[%s227 + $0x3c] sm:$0xf] %vm1539, %v1426
      %1556 = vst.msk [vmem:[%s227 + $0x40] sm:$0xf] %vm1539, %v1427
      %1557 = vst.msk [vmem:[%s227 + $0x44] sm:$0xf] %vm1539, %v1428
      %1558 = vst.msk [vmem:[%s227 + $0x48] sm:$0xf] %vm1539, %v1429
      %1559 = vst.msk [vmem:[%s227 + $0x4c] sm:$0xf] %vm1539, %v1430
      %1560 = vst.msk [vmem:[%s227 + $0x50] sm:$0xf] %vm1539, %v1431
      %1561 = vst.msk [vmem:[%s227 + $0x54] sm:$0xf] %vm1539, %v1432
      %1562 = vst.msk [vmem:[%s227 + $0x58] sm:$0xf] %vm1539, %v1433
      %1563 = vst.msk [vmem:[%s227 + $0x5c] sm:$0xf] %vm1539, %v1434
      %1564 = vst.msk [vmem:[%s227 + $0x60] sm:$0xf] %vm1539, %v1435
      %1565 = vst.msk [vmem:[%s227 + $0x64] sm:$0xf] %vm1539, %v1436
      %1566 = vst.msk [vmem:[%s227 + $0x68] sm:$0xf] %vm1539, %v1437
      %1567 = vst.msk [vmem:[%s227 + $0x6c] sm:$0xf] %vm1539, %v1438
      %1568 = vst.msk [vmem:[%s227 + $0x70] sm:$0xf] %vm1539, %v1439
      %1569 = vst.msk [vmem:[%s227 + $0x74] sm:$0xf] %vm1539, %v1440
      %1570 = vst.msk [vmem:[%s227 + $0x78] sm:$0xf] %vm1539, %v1441
      %1571 = vst.msk [vmem:[%s227 + $0x7c] sm:$0xf] %vm1539, %v1442
      %1572 = vst.msk [vmem:[%s227 + $0x80] sm:$0xf] %vm1539, %v1443
      %1573 = vst.msk [vmem:[%s227 + $0x84] sm:$0xf] %vm1539, %v1444
      %1574 = vst.msk [vmem:[%s227 + $0x88] sm:$0xf] %vm1539, %v1445
      %1575 = vst.msk [vmem:[%s227 + $0x8c] sm:$0xf] %vm1539, %v1446
      %1576 = vst.msk [vmem:[%s227 + $0x90] sm:$0xf] %vm1539, %v1447
      %1577 = vst.msk [vmem:[%s227 + $0x94] sm:$0xf] %vm1539, %v1448
      %1578 = vst.msk [vmem:[%s227 + $0x98] sm:$0xf] %vm1539, %v1449
      %1579 = vst.msk [vmem:[%s227 + $0x9c] sm:$0xf] %vm1539, %v1450
      %1580 = vst.msk [vmem:[%s227 + $0xa0] sm:$0xf] %vm1539, %v1451
      %1581 = vst.msk [vmem:[%s227 + $0xa4] sm:$0xf] %vm1539, %v1452
      %1582 = vst.msk [vmem:[%s227 + $0xa8] sm:$0xf] %vm1539, %v1453
      %1583 = vst.msk [vmem:[%s227 + $0xac] sm:$0xf] %vm1539, %v1454
      %1584 = vst.msk [vmem:[%s227 + $0xb0] sm:$0xf] %vm1539, %v1455
      %1585 = vst.msk [vmem:[%s227 + $0xb4] sm:$0xf] %vm1539, %v1456
      %1586 = vst.msk [vmem:[%s227 + $0xb8] sm:$0xf] %vm1539, %v1457
      %1587 = vst.msk [vmem:[%s227 + $0xbc] sm:$0xf] %vm1539, %v1458
      %1588 = vst.msk [vmem:[%s227 + $0xc0] sm:$0xf] %vm1539, %v1459
      %1589 = vst.msk [vmem:[%s227 + $0xc4] sm:$0xf] %vm1539, %v1460
      %1590 = vst.msk [vmem:[%s227 + $0xc8] sm:$0xf] %vm1539, %v1461
      %1591 = vst.msk [vmem:[%s227 + $0xcc] sm:$0xf] %vm1539, %v1462
      %1592 = vst.msk [vmem:[%s227 + $0xd0] sm:$0xf] %vm1539, %v1463
      %1593 = vst.msk [vmem:[%s227 + $0xd4] sm:$0xf] %vm1539, %v1464
      %1594 = vst.msk [vmem:[%s227 + $0xd8] sm:$0xf] %vm1539, %v1465
      %1595 = vst.msk [vmem:[%s227 + $0xdc] sm:$0xf] %vm1539, %v1466
      %1596 = vst.msk [vmem:[%s227 + $0xe0] sm:$0xf] %vm1539, %v1467
      %1597 = vst.msk [vmem:[%s227 + $0xe4] sm:$0xf] %vm1539, %v1468
      %1598 = vst.msk [vmem:[%s227 + $0xe8] sm:$0xf] %vm1539, %v1469
      %1599 = vst.msk [vmem:[%s227 + $0xec] sm:$0xf] %vm1539, %v1470
      %1600 = vst.msk [vmem:[%s227 + $0xf0] sm:$0xf] %vm1539, %v1471
      %1601 = vst.msk [vmem:[%s227 + $0xf4] sm:$0xf] %vm1539, %v1472
      %1602 = vst.msk [vmem:[%s227 + $0xf8] sm:$0xf] %vm1539, %v1473
      %1603 = vst.msk [vmem:[%s227 + $0xfc] sm:$0xf] %vm1539, %v1474
      %s1604 = smul.u32 64, %s19
      %p1605 = scmp.lt.s32.totalorder %s18, 0
      %s1606 = scalar_select %p1605, %s18, 0
      %p1607 = scmp.lt.s32.totalorder %s1604, 255
      %s1608 = scalar_select %p1607, %s1604, 255
      %p1609 = scmp.lt.s32.totalorder %s20, 0
      %s1610 = scalar_select %p1609, %s20, 0
      %s1611 = sadd.s32 %s1610, %s1608
      %s1612 = smul.addr %s1606, 256
      %s1613 = sadd.s32 %s1611, %s1612
      %s1614 = smul.addr %s1613, 4
      %s1615 = scalar_lea.vmem %s2, %s1614
      // Predicated region
      $region29: #{tpu_custom_call.1} parent=27 // pred_check
        %p1616 = pneg %p110
      $region30: #{tpu_custom_call.1} parent=27 // pred_check_branch
        %1618 = sbr.rel (%p1616) target = $region32
      $region31: #{tpu_custom_call.1} parent=27 // pred_region
        %s1619 = smul.u32 64, %s19
      $region32: #{tpu_custom_call.1} parent=27 // pred_fallthru
        _
    $region28: #{tpu_custom_call.1} parent=5 // pred_fallthru
      _
    %p1620 = scmp.le.s32.totalorder 2, %s8
    // Predicated region
    $region33: #{tpu_custom_call.1} parent=5 // pred_check
      %p1621 = pneg %p1620
    $region34: #{tpu_custom_call.1} parent=5 // pred_check_branch
      %1623 = sbr.rel (%p1621) target = $region36
    $region35: #{tpu_custom_call.1} parent=5 // pred_region
      %s1624 = ssub.s32 %s8, 2
      // Predicated region
      $region37: #{tpu_custom_call.1} parent=35 // pred_check
        %p1625 = pneg %p116
      $region38: #{tpu_custom_call.1} parent=35 // pred_check_branch
        %1627 = sbr.rel (%p1625) target = $region40
      $region39: #{tpu_custom_call.1} parent=35 // pred_region
        %s1628 = smul.u32 64, %s22
        %p1629 = scmp.lt.s32.totalorder %s21, 0
        %s1630 = scalar_select %p1629, %s21, 0
        %p1631 = scmp.lt.s32.totalorder %s1628, 255
        %s1632 = scalar_select %p1631, %s1628, 255
        %p1633 = scmp.lt.s32.totalorder %s23, 0
        %s1634 = scalar_select %p1633, %s23, 0
        %s1635 = sadd.s32 %s1634, %s1632
        %s1636 = smul.addr %s1630, 256
        %s1637 = sadd.s32 %s1635, %s1636
        %s1638 = smul.addr %s1637, 4
        %s1639 = scalar_lea.vmem %s2, %s1638
      $region40: #{tpu_custom_call.1} parent=35 // pred_fallthru
        _
    $region36: #{tpu_custom_call.1} parent=5 // pred_fallthru
      _
  $region6: #{tpu_custom_call.1} parent=0 // loop_footer
    %s12 = sadd.s32 1, %s8
  $region7: #{tpu_custom_call.1} parent=0 // loop_footer_branch
    %7 = sbr.rel target = $region3
  $region8: #{tpu_custom_call.1} parent=0 // loop_exit
    _

</llo_original>
